<compile_context>
chip_gen: v7x
topology: tpu7x:2x2x1
jax: 0.10.0
libtpu: 0.0.40
codegen_flags: <defaults>
</compile_context>

<pallas_src>
import math

import jax
import jax.numpy as jnp
from jax.experimental import pallas as pl
from jax.experimental.pallas import tpu as pltpu

LANE = 128


def _round_up(n, m):
    return ((n + m - 1) // m) * m


def _vmem_capacity_bytes():
    try:
        return int(pltpu.get_tpu_info().vmem_capacity_bytes)
    except Exception:
        return 64 * 1024 * 1024   # conservative (v7x-sized) default


def ae_classifier_kernel(x_ref,
                         w1_ref, b1_ref,   # encoder Linear(D -> D/2)
                         w2_ref, b2_ref,   # encoder Linear(D/2 -> D/4)
                         w3_ref, b3_ref,   # decoder Linear(D/4 -> D/2)
                         w4_ref, b4_ref,   # decoder Linear(D/2 -> D)
                         w5_ref, b5_ref,   # classifier Linear(D -> 1), lane-padded
                         enc_ref, dec_ref, cls_ref):
    x = x_ref[...]                                                # bf16 [TB, Dp]

    # ---- encoder: Linear -> ReLU -> Linear ----
    h1 = jnp.dot(x, w1_ref[...], preferred_element_type=jnp.float32) + b1_ref[...]
    h1 = jnp.maximum(h1, 0.0).astype(jnp.bfloat16)                # f32 temp dies here
    enc = jnp.dot(h1, w2_ref[...], preferred_element_type=jnp.float32) + b2_ref[...]
    enc_ref[...] = enc.astype(enc_ref.dtype)                      # bf16 writeback

    # ---- decoder: ReLU -> Linear -> ReLU -> Linear ----
    h2 = jnp.maximum(enc, 0.0).astype(jnp.bfloat16)
    h3 = jnp.dot(h2, w3_ref[...], preferred_element_type=jnp.float32) + b3_ref[...]
    h3 = jnp.maximum(h3, 0.0).astype(jnp.bfloat16)
    dec = jnp.dot(h3, w4_ref[...], preferred_element_type=jnp.float32) + b4_ref[...]
    dec_ref[...] = dec.astype(dec_ref.dtype)                      # bf16 writeback

    # ---- classifier: ReLU -> Linear(D->1) -> Sigmoid ----
    # w5 is a [Dp, 128] bf16 tile with the real weight column in lane 0, so
    # this runs on the MXU (which has slack between the four big matmuls) and
    # the [TB, 128] result is already lane-dense. The wrapper slices lane 0.
    h4 = jnp.maximum(dec, 0.0).astype(jnp.bfloat16)
    logits = jnp.dot(h4, w5_ref[...], preferred_element_type=jnp.float32) + b5_ref[...]
    cls_ref[...] = jax.nn.sigmoid(logits).astype(cls_ref.dtype)


def ae_classifier_forward(x, params):
    """x: [B, D] float32. params: dict of ([in, out]) weights and (1, out) biases."""
    B, D = x.shape
    d2 = params["w1"].shape[1]   # second/fourth layer size
    d3 = params["w2"].shape[1]   # third layer size

    Dp = _round_up(D, LANE)
    d2p = _round_up(d2, LANE)
    d3p = _round_up(d3, LANE)

    # --- generation-aware VMEM limit / batch-tile cap ---
    vmem_cap = _vmem_capacity_bytes()
    if vmem_cap > 96 * 1024 * 1024:            # v5e / v6e: 128 MiB physical VMEM
        vmem_limit, tb_cap = 100 * 1024 * 1024, 512
    else:                                      # v7x: 64 MiB physical VMEM
        vmem_limit, tb_cap = 48 * 1024 * 1024, 256

    # Batch tile: multiple of 16 (bf16 sublane packing), capped per generation.
    TB = min(_round_up(B, 16), tb_cap)
    Bp = _round_up(B, TB)
    # Ensure >= 2 grid steps when the batch allows so both v7x TensorCores get
    # work on the "parallel" axis; negligible overhead on single-TC chips.
    if Bp // TB < 2 and Bp >= 32:
        TB = _round_up(Bp // 2, 16)
        Bp = _round_up(B, TB)
    grid = (Bp // TB,)

    def pad2(a, rows, cols, dtype):
        out = jnp.zeros((rows, cols), dtype)
        return out.at[:a.shape[0], :a.shape[1]].set(a.astype(dtype))

    xp = pad2(x, Bp, Dp, jnp.bfloat16)
    w1 = pad2(params["w1"], Dp, d2p, jnp.bfloat16)
    b1 = pad2(params["b1"], 1, d2p, jnp.float32)
    w2 = pad2(params["w2"], d2p, d3p, jnp.bfloat16)
    b2 = pad2(params["b2"], 1, d3p, jnp.float32)
    w3 = pad2(params["w3"], d3p, d2p, jnp.bfloat16)
    b3 = pad2(params["b3"], 1, d2p, jnp.float32)
    w4 = pad2(params["w4"], d2p, Dp, jnp.bfloat16)
    b4 = pad2(params["b4"], 1, Dp, jnp.float32)
    w5 = pad2(params["w5"], Dp, LANE, jnp.bfloat16)   # real weights in lane 0
    b5 = pad2(params["b5"], 1, LANE, jnp.float32)

    operands = (xp, w1, b1, w2, b2, w3, b3, w4, b4, w5, b5)

    out_shapes = (
        jax.ShapeDtypeStruct((Bp, d3p), jnp.bfloat16),   # encode (padded)
        jax.ShapeDtypeStruct((Bp, Dp), jnp.bfloat16),    # decode (padded)
        jax.ShapeDtypeStruct((Bp, LANE), jnp.float32),   # classify (lane-dense)
    )

    flops = 2 * Bp * (Dp * d2p + d2p * d3p + d3p * d2p + d2p * Dp + Dp * LANE)
    bytes_accessed = (
        sum(int(a.size) * a.dtype.itemsize for a in operands)
        + sum(math.prod(s.shape) * s.dtype.itemsize for s in out_shapes))

    def batched(c):
        return pl.BlockSpec((TB, c), lambda i: (i, 0))

    def run(single_buffer_weights):
        if single_buffer_weights:
            def resident(r, c):
                # Constant index_map => DMA'd once; Buffered(1) drops the
                # second (useless) pipeline buffer and halves weight VMEM.
                return pl.BlockSpec((r, c), lambda i: (0, 0),
                                    pipeline_mode=pl.Buffered(1))
        else:
            def resident(r, c):
                return pl.BlockSpec((r, c), lambda i: (0, 0))

        in_specs = [
            batched(Dp),                                  # x tile
            resident(Dp, d2p), resident(1, d2p),          # w1, b1
            resident(d2p, d3p), resident(1, d3p),         # w2, b2
            resident(d3p, d2p), resident(1, d2p),         # w3, b3
            resident(d2p, Dp), resident(1, Dp),           # w4, b4
            resident(Dp, LANE), resident(1, LANE),        # w5, b5
        ]
        out_specs = (batched(d3p), batched(Dp), batched(LANE))

        return pl.pallas_call(
            ae_classifier_kernel,
            out_shape=out_shapes,
            grid=grid,
            in_specs=in_specs,
            out_specs=out_specs,
            compiler_params=pltpu.CompilerParams(
                dimension_semantics=("parallel",),
                vmem_limit_bytes=vmem_limit,
            ),
            cost_estimate=pl.CostEstimate(
                flops=int(flops), transcendentals=int(Bp * LANE),
                bytes_accessed=int(bytes_accessed)),
        )(*operands)

    try:
        enc_p, dec_p, cls_p = run(True)
    except Exception:
        # Fallback for Pallas versions without BlockSpec(pipeline_mode=...):
        # default double-buffered resident specs (identical semantics).
        enc_p, dec_p, cls_p = run(False)

    return (enc_p[:B, :d3].astype(jnp.float32),
            dec_p[:B, :D].astype(jnp.float32),
            cls_p[:B, :1])


def init_params(input_dim, key):
    """Deterministic synthetic init matching nn.Linear shapes.

    PyTorch Linear weight is (out, in); we store the transpose (in, out) so the
    kernel can do x @ W. Biases are stored as (1, out) for TPU-friendly 2D.
    """
    nearest_power_of_2 = 2 ** round(math.log2(input_dim))
    d2 = nearest_power_of_2 // 2
    d3 = nearest_power_of_2 // 4

    dims = [
        ("w1", "b1", input_dim, d2),
        ("w2", "b2", d2, d3),
        ("w3", "b3", d3, d2),
        ("w4", "b4", d2, input_dim),
        ("w5", "b5", input_dim, 1),
    ]
    params = {}
    for wname, bname, fan_in, fan_out in dims:
        key, kw, kb = jax.random.split(key, 3)
        bound = 1.0 / math.sqrt(fan_in)
        params[wname] = jax.random.uniform(
            kw, (fan_in, fan_out), jnp.float32, -bound, bound)
        params[bname] = jax.random.uniform(
            kb, (1, fan_out), jnp.float32, -bound, bound)
    return params


def _reference_forward(x, params):
    """Pure-JAX f32 reference of the PyTorch forward, for a sanity check."""
    h1 = jnp.maximum(x @ params["w1"] + params["b1"], 0.0)
    enc = h1 @ params["w2"] + params["b2"]
    h3 = jnp.maximum(jnp.maximum(enc, 0.0) @ params["w3"] + params["b3"], 0.0)
    dec = h3 @ params["w4"] + params["b4"]
    logits = jnp.maximum(dec, 0.0) @ params["w5"] + params["b5"]
    return enc, dec, jax.nn.sigmoid(logits)


if __name__ == "__main__":
    input_dim = 32
    batch = 8

    key = jax.random.PRNGKey(0)
    key, kx = jax.random.split(key)
    x = jax.random.normal(kx, (batch, input_dim), dtype=jnp.float32)

    params = init_params(input_dim, key)

    encode, decode, classify = jax.block_until_ready(
        ae_classifier_forward(x, params))

    assert encode.shape == (batch, input_dim // 4)
    assert decode.shape == (batch, input_dim)
    assert classify.shape == (batch, 1)
    assert bool(jnp.all((classify >= 0.0) & (classify <= 1.0)))

    # Numerical sanity check vs. f32 reference (kernel uses bf16 matmul inputs
    # / bf16 enc/dec stores with f32 accumulation, so tolerances are generous).
    enc_ref, dec_ref, cls_ref = _reference_forward(x, params)
    assert bool(jnp.allclose(encode, enc_ref, atol=0.1, rtol=0.1))
    assert bool(jnp.allclose(decode, dec_ref, atol=0.1, rtol=0.1))
    assert bool(jnp.allclose(classify, cls_ref, atol=0.1, rtol=0.1))

    print("KERNEL_OK")
</pallas_src>

<mosaic_0001>
module attributes {stable_mosaic.version = 11 : i64} {
  func.func @ae_classifier_kernel(%arg0: i32, %arg1: memref<16x128xbf16, #tpu.memory_space<vmem>>, %arg2: memref<128x128xbf16, #tpu.memory_space<vmem>>, %arg3: memref<1x128xf32, #tpu.memory_space<vmem>>, %arg4: memref<128x128xbf16, #tpu.memory_space<vmem>>, %arg5: memref<1x128xf32, #tpu.memory_space<vmem>>, %arg6: memref<128x128xbf16, #tpu.memory_space<vmem>>, %arg7: memref<1x128xf32, #tpu.memory_space<vmem>>, %arg8: memref<128x128xbf16, #tpu.memory_space<vmem>>, %arg9: memref<1x128xf32, #tpu.memory_space<vmem>>, %arg10: memref<128x128xbf16, #tpu.memory_space<vmem>>, %arg11: memref<1x128xf32, #tpu.memory_space<vmem>>, %arg12: memref<16x128xbf16, #tpu.memory_space<vmem>>, %arg13: memref<16x128xbf16, #tpu.memory_space<vmem>>, %arg14: memref<16x128xf32, #tpu.memory_space<vmem>>) attributes {dimension_semantics = [#tpu.dimension_semantics<parallel>], iteration_bounds = array<i64: 1>, scalar_prefetch = 0 : i64, scratch_operands = 0 : i64, tpu.core_type = #tpu.core_type<tc>, window_params = [{transform_indices = @transform_0, window_bounds = array<i64: 16, 128>}, {pipeline_mode = #tpu.pipeline_mode<synchronous>, transform_indices = @transform_1, window_bounds = array<i64: 128, 128>}, {pipeline_mode = #tpu.pipeline_mode<synchronous>, transform_indices = @transform_2, window_bounds = array<i64: 1, 128>}, {pipeline_mode = #tpu.pipeline_mode<synchronous>, transform_indices = @transform_3, window_bounds = array<i64: 128, 128>}, {pipeline_mode = #tpu.pipeline_mode<synchronous>, transform_indices = @transform_4, window_bounds = array<i64: 1, 128>}, {pipeline_mode = #tpu.pipeline_mode<synchronous>, transform_indices = @transform_5, window_bounds = array<i64: 128, 128>}, {pipeline_mode = #tpu.pipeline_mode<synchronous>, transform_indices = @transform_6, window_bounds = array<i64: 1, 128>}, {pipeline_mode = #tpu.pipeline_mode<synchronous>, transform_indices = @transform_7, window_bounds = array<i64: 128, 128>}, {pipeline_mode = #tpu.pipeline_mode<synchronous>, transform_indices = @transform_8, window_bounds = array<i64: 1, 128>}, {pipeline_mode = #tpu.pipeline_mode<synchronous>, transform_indices = @transform_9, window_bounds = array<i64: 128, 128>}, {pipeline_mode = #tpu.pipeline_mode<synchronous>, transform_indices = @transform_10, window_bounds = array<i64: 1, 128>}, {transform_indices = @transform_11, window_bounds = array<i64: 16, 128>}, {transform_indices = @transform_12, window_bounds = array<i64: 16, 128>}, {transform_indices = @transform_13, window_bounds = array<i64: 16, 128>}]} {
    %c0 = arith.constant 0 : index
    %c0_0 = arith.constant 0 : index
    %0 = vector.load %arg1[%c0, %c0_0] : memref<16x128xbf16, #tpu.memory_space<vmem>>, vector<16x128xbf16>
    %c0_1 = arith.constant 0 : index
    %c0_2 = arith.constant 0 : index
    %1 = vector.load %arg2[%c0_1, %c0_2] : memref<128x128xbf16, #tpu.memory_space<vmem>>, vector<128x128xbf16>
    %cst = arith.constant dense<0.000000e+00> : vector<16x128xf32>
    %2 = tpu.matmul %0, %1, %cst {dimension_numbers = #tpu.dot_dimension_numbers<[1], [0], [0], [1], [0, 0, 1, 1], [], []>} : vector<16x128xbf16>, vector<128x128xbf16>, vector<16x128xf32> -> vector<16x128xf32>
    %c0_3 = arith.constant 0 : index
    %c0_4 = arith.constant 0 : index
    %3 = vector.load %arg3[%c0_3, %c0_4] : memref<1x128xf32, #tpu.memory_space<vmem>>, vector<1x128xf32>
    %4 = vector.broadcast %3 : vector<1x128xf32> to vector<16x128xf32>
    %5 = arith.addf %2, %4 : vector<16x128xf32>
    %cst_5 = arith.constant 0.000000e+00 : f32
    %6 = vector.broadcast %cst_5 : f32 to vector<16x128xf32>
    %7 = arith.maximumf %5, %6 : vector<16x128xf32>
    %8 = arith.truncf %7 : vector<16x128xf32> to vector<16x128xbf16>
    %c0_6 = arith.constant 0 : index
    %c0_7 = arith.constant 0 : index
    %9 = vector.load %arg4[%c0_6, %c0_7] : memref<128x128xbf16, #tpu.memory_space<vmem>>, vector<128x128xbf16>
    %cst_8 = arith.constant dense<0.000000e+00> : vector<16x128xf32>
    %10 = tpu.matmul %8, %9, %cst_8 {dimension_numbers = #tpu.dot_dimension_numbers<[1], [0], [0], [1], [0, 0, 1, 1], [], []>} : vector<16x128xbf16>, vector<128x128xbf16>, vector<16x128xf32> -> vector<16x128xf32>
    %c0_9 = arith.constant 0 : index
    %c0_10 = arith.constant 0 : index
    %11 = vector.load %arg5[%c0_9, %c0_10] : memref<1x128xf32, #tpu.memory_space<vmem>>, vector<1x128xf32>
    %12 = vector.broadcast %11 : vector<1x128xf32> to vector<16x128xf32>
    %13 = arith.addf %10, %12 : vector<16x128xf32>
    %14 = arith.truncf %13 : vector<16x128xf32> to vector<16x128xbf16>
    %c0_11 = arith.constant 0 : index
    %c0_12 = arith.constant 0 : index
    %15 = vector.load %arg12[%c0_11, %c0_12] : memref<16x128xbf16, #tpu.memory_space<vmem>>, vector<16x128xbf16>
    tpu.vector_store %arg12[%c0_11, %c0_12], %14 {strides = array<i32>} : memref<16x128xbf16, #tpu.memory_space<vmem>>, vector<16x128xbf16>,
    %cst_13 = arith.constant 0.000000e+00 : f32
    %16 = vector.broadcast %cst_13 : f32 to vector<16x128xf32>
    %17 = arith.maximumf %13, %16 : vector<16x128xf32>
    %18 = arith.truncf %17 : vector<16x128xf32> to vector<16x128xbf16>
    %c0_14 = arith.constant 0 : index
    %c0_15 = arith.constant 0 : index
    %19 = vector.load %arg6[%c0_14, %c0_15] : memref<128x128xbf16, #tpu.memory_space<vmem>>, vector<128x128xbf16>
    %cst_16 = arith.constant dense<0.000000e+00> : vector<16x128xf32>
    %20 = tpu.matmul %18, %19, %cst_16 {dimension_numbers = #tpu.dot_dimension_numbers<[1], [0], [0], [1], [0, 0, 1, 1], [], []>} : vector<16x128xbf16>, vector<128x128xbf16>, vector<16x128xf32> -> vector<16x128xf32>
    %c0_17 = arith.constant 0 : index
    %c0_18 = arith.constant 0 : index
    %21 = vector.load %arg7[%c0_17, %c0_18] : memref<1x128xf32, #tpu.memory_space<vmem>>, vector<1x128xf32>
    %22 = vector.broadcast %21 : vector<1x128xf32> to vector<16x128xf32>
    %23 = arith.addf %20, %22 : vector<16x128xf32>
    %cst_19 = arith.constant 0.000000e+00 : f32
    %24 = vector.broadcast %cst_19 : f32 to vector<16x128xf32>
    %25 = arith.maximumf %23, %24 : vector<16x128xf32>
    %26 = arith.truncf %25 : vector<16x128xf32> to vector<16x128xbf16>
    %c0_20 = arith.constant 0 : index
    %c0_21 = arith.constant 0 : index
    %27 = vector.load %arg8[%c0_20, %c0_21] : memref<128x128xbf16, #tpu.memory_space<vmem>>, vector<128x128xbf16>
    %cst_22 = arith.constant dense<0.000000e+00> : vector<16x128xf32>
    %28 = tpu.matmul %26, %27, %cst_22 {dimension_numbers = #tpu.dot_dimension_numbers<[1], [0], [0], [1], [0, 0, 1, 1], [], []>} : vector<16x128xbf16>, vector<128x128xbf16>, vector<16x128xf32> -> vector<16x128xf32>
    %c0_23 = arith.constant 0 : index
    %c0_24 = arith.constant 0 : index
    %29 = vector.load %arg9[%c0_23, %c0_24] : memref<1x128xf32, #tpu.memory_space<vmem>>, vector<1x128xf32>
    %30 = vector.broadcast %29 : vector<1x128xf32> to vector<16x128xf32>
    %31 = arith.addf %28, %30 : vector<16x128xf32>
    %32 = arith.truncf %31 : vector<16x128xf32> to vector<16x128xbf16>
    %c0_25 = arith.constant 0 : index
    %c0_26 = arith.constant 0 : index
    %33 = vector.load %arg13[%c0_25, %c0_26] : memref<16x128xbf16, #tpu.memory_space<vmem>>, vector<16x128xbf16>
    tpu.vector_store %arg13[%c0_25, %c0_26], %32 {strides = array<i32>} : memref<16x128xbf16, #tpu.memory_space<vmem>>, vector<16x128xbf16>,
    %cst_27 = arith.constant 0.000000e+00 : f32
    %34 = vector.broadcast %cst_27 : f32 to vector<16x128xf32>
    %35 = arith.maximumf %31, %34 : vector<16x128xf32>
    %36 = arith.truncf %35 : vector<16x128xf32> to vector<16x128xbf16>
    %c0_28 = arith.constant 0 : index
    %c0_29 = arith.constant 0 : index
    %37 = vector.load %arg10[%c0_28, %c0_29] : memref<128x128xbf16, #tpu.memory_space<vmem>>, vector<128x128xbf16>
    %cst_30 = arith.constant dense<0.000000e+00> : vector<16x128xf32>
    %38 = tpu.matmul %36, %37, %cst_30 {dimension_numbers = #tpu.dot_dimension_numbers<[1], [0], [0], [1], [0, 0, 1, 1], [], []>} : vector<16x128xbf16>, vector<128x128xbf16>, vector<16x128xf32> -> vector<16x128xf32>
    %c0_31 = arith.constant 0 : index
    %c0_32 = arith.constant 0 : index
    %39 = vector.load %arg11[%c0_31, %c0_32] : memref<1x128xf32, #tpu.memory_space<vmem>>, vector<1x128xf32>
    %40 = vector.broadcast %39 : vector<1x128xf32> to vector<16x128xf32>
    %41 = arith.addf %38, %40 : vector<16x128xf32>
    %42 = arith.negf %41 : vector<16x128xf32>
    %43 = math.exp %42 : vector<16x128xf32>
    %cst_33 = arith.constant 1.000000e+00 : f32
    %44 = vector.broadcast %cst_33 : f32 to vector<16x128xf32>
    %45 = arith.addf %44, %43 : vector<16x128xf32>
    %46 = arith.divf %44, %45 : vector<16x128xf32>
    %c0_34 = arith.constant 0 : index
    %c0_35 = arith.constant 0 : index
    %47 = vector.load %arg14[%c0_34, %c0_35] : memref<16x128xf32, #tpu.memory_space<vmem>>, vector<16x128xf32>
    tpu.vector_store %arg14[%c0_34, %c0_35], %46 {strides = array<i32>} : memref<16x128xf32, #tpu.memory_space<vmem>>, vector<16x128xf32>,
    return
  }
  func.func @transform_0(%arg0: i32) -> (i32, i32) {
    %c0_i32 = arith.constant 0 : i32
    %c0_i32_0 = arith.constant 0 : i32
    return %arg0, %c0_i32 : i32, i32
  }
  func.func @transform_1(%arg0: i32) -> (i32, i32) {
    %c0_i32 = arith.constant 0 : i32
    %c0_i32_0 = arith.constant 0 : i32
    %c0_i32_1 = arith.constant 0 : i32
    return %c0_i32, %c0_i32_0 : i32, i32
  }
  func.func @transform_2(%arg0: i32) -> (i32, i32) {
    %c0_i32 = arith.constant 0 : i32
    %c0_i32_0 = arith.constant 0 : i32
    %c0_i32_1 = arith.constant 0 : i32
    return %c0_i32, %c0_i32_0 : i32, i32
  }
  func.func @transform_3(%arg0: i32) -> (i32, i32) {
    %c0_i32 = arith.constant 0 : i32
    %c0_i32_0 = arith.constant 0 : i32
    %c0_i32_1 = arith.constant 0 : i32
    return %c0_i32, %c0_i32_0 : i32, i32
  }
  func.func @transform_4(%arg0: i32) -> (i32, i32) {
    %c0_i32 = arith.constant 0 : i32
    %c0_i32_0 = arith.constant 0 : i32
    %c0_i32_1 = arith.constant 0 : i32
    return %c0_i32, %c0_i32_0 : i32, i32
  }
  func.func @transform_5(%arg0: i32) -> (i32, i32) {
    %c0_i32 = arith.constant 0 : i32
    %c0_i32_0 = arith.constant 0 : i32
    %c0_i32_1 = arith.constant 0 : i32
    return %c0_i32, %c0_i32_0 : i32, i32
  }
  func.func @transform_6(%arg0: i32) -> (i32, i32) {
    %c0_i32 = arith.constant 0 : i32
    %c0_i32_0 = arith.constant 0 : i32
    %c0_i32_1 = arith.constant 0 : i32
    return %c0_i32, %c0_i32_0 : i32, i32
  }
  func.func @transform_7(%arg0: i32) -> (i32, i32) {
    %c0_i32 = arith.constant 0 : i32
    %c0_i32_0 = arith.constant 0 : i32
    %c0_i32_1 = arith.constant 0 : i32
    return %c0_i32, %c0_i32_0 : i32, i32
  }
  func.func @transform_8(%arg0: i32) -> (i32, i32) {
    %c0_i32 = arith.constant 0 : i32
    %c0_i32_0 = arith.constant 0 : i32
    %c0_i32_1 = arith.constant 0 : i32
    return %c0_i32, %c0_i32_0 : i32, i32
  }
  func.func @transform_9(%arg0: i32) -> (i32, i32) {
    %c0_i32 = arith.constant 0 : i32
    %c0_i32_0 = arith.constant 0 : i32
    %c0_i32_1 = arith.constant 0 : i32
    return %c0_i32, %c0_i32_0 : i32, i32
  }
  func.func @transform_10(%arg0: i32) -> (i32, i32) {
    %c0_i32 = arith.constant 0 : i32
    %c0_i32_0 = arith.constant 0 : i32
    %c0_i32_1 = arith.constant 0 : i32
    return %c0_i32, %c0_i32_0 : i32, i32
  }
  func.func @transform_11(%arg0: i32) -> (i32, i32) {
    %c0_i32 = arith.constant 0 : i32
    %c0_i32_0 = arith.constant 0 : i32
    return %arg0, %c0_i32 : i32, i32
  }
  func.func @transform_12(%arg0: i32) -> (i32, i32) {
    %c0_i32 = arith.constant 0 : i32
    %c0_i32_0 = arith.constant 0 : i32
    return %arg0, %c0_i32 : i32, i32
  }
  func.func @transform_13(%arg0: i32) -> (i32, i32) {
    %c0_i32 = arith.constant 0 : i32
    %c0_i32_0 = arith.constant 0 : i32
    return %arg0, %c0_i32 : i32, i32
  }
}

module attributes {stable_mosaic.version = 11 : i64} {
  func.func @ae_classifier_kernel(%arg0: i32, %arg1: memref<16x128xbf16, #tpu.memory_space<vmem>>, %arg2: memref<128x128xbf16, #tpu.memory_space<vmem>>, %arg3: memref<1x128xf32, #tpu.memory_space<vmem>>, %arg4: memref<128x128xbf16, #tpu.memory_space<vmem>>, %arg5: memref<1x128xf32, #tpu.memory_space<vmem>>, %arg6: memref<128x128xbf16, #tpu.memory_space<vmem>>, %arg7: memref<1x128xf32, #tpu.memory_space<vmem>>, %arg8: memref<128x128xbf16, #tpu.memory_space<vmem>>, %arg9: memref<1x128xf32, #tpu.memory_space<vmem>>, %arg10: memref<128x128xbf16, #tpu.memory_space<vmem>>, %arg11: memref<1x128xf32, #tpu.memory_space<vmem>>, %arg12: memref<16x128xbf16, #tpu.memory_space<vmem>>, %arg13: memref<16x128xbf16, #tpu.memory_space<vmem>>, %arg14: memref<16x128xf32, #tpu.memory_space<vmem>>) attributes {dimension_semantics = [#tpu.dimension_semantics<parallel>], iteration_bounds = array<i64: 1>, scalar_prefetch = 0 : i64, scratch_operands = 0 : i64, tpu.core_type = #tpu.core_type<tc>, window_params = [{transform_indices = @transform_0, window_bounds = array<i64: 16, 128>}, {pipeline_mode = #tpu.pipeline_mode<synchronous>, transform_indices = @transform_1, window_bounds = array<i64: 128, 128>}, {pipeline_mode = #tpu.pipeline_mode<synchronous>, transform_indices = @transform_2, window_bounds = array<i64: 1, 128>}, {pipeline_mode = #tpu.pipeline_mode<synchronous>, transform_indices = @transform_3, window_bounds = array<i64: 128, 128>}, {pipeline_mode = #tpu.pipeline_mode<synchronous>, transform_indices = @transform_4, window_bounds = array<i64: 1, 128>}, {pipeline_mode = #tpu.pipeline_mode<synchronous>, transform_indices = @transform_5, window_bounds = array<i64: 128, 128>}, {pipeline_mode = #tpu.pipeline_mode<synchronous>, transform_indices = @transform_6, window_bounds = array<i64: 1, 128>}, {pipeline_mode = #tpu.pipeline_mode<synchronous>, transform_indices = @transform_7, window_bounds = array<i64: 128, 128>}, {pipeline_mode = #tpu.pipeline_mode<synchronous>, transform_indices = @transform_8, window_bounds = array<i64: 1, 128>}, {pipeline_mode = #tpu.pipeline_mode<synchronous>, transform_indices = @transform_9, window_bounds = array<i64: 128, 128>}, {pipeline_mode = #tpu.pipeline_mode<synchronous>, transform_indices = @transform_10, window_bounds = array<i64: 1, 128>}, {transform_indices = @transform_11, window_bounds = array<i64: 16, 128>}, {transform_indices = @transform_12, window_bounds = array<i64: 16, 128>}, {transform_indices = @transform_13, window_bounds = array<i64: 16, 128>}]} {
    %c0 = arith.constant 0 : index
    %c0_0 = arith.constant 0 : index
    %0 = vector.load %arg1[%c0, %c0_0] : memref<16x128xbf16, #tpu.memory_space<vmem>>, vector<16x128xbf16>
    %c0_1 = arith.constant 0 : index
    %c0_2 = arith.constant 0 : index
    %1 = vector.load %arg2[%c0_1, %c0_2] : memref<128x128xbf16, #tpu.memory_space<vmem>>, vector<128x128xbf16>
    %cst = arith.constant dense<0.000000e+00> : vector<16x128xf32>
    %2 = tpu.matmul %0, %1, %cst {dimension_numbers = #tpu.dot_dimension_numbers<[1], [0], [0], [1], [0, 0, 1, 1], [], []>} : vector<16x128xbf16>, vector<128x128xbf16>, vector<16x128xf32> -> vector<16x128xf32>
    %c0_3 = arith.constant 0 : index
    %c0_4 = arith.constant 0 : index
    %3 = vector.load %arg3[%c0_3, %c0_4] : memref<1x128xf32, #tpu.memory_space<vmem>>, vector<1x128xf32>
    %4 = vector.broadcast %3 : vector<1x128xf32> to vector<16x128xf32>
    %5 = arith.addf %2, %4 : vector<16x128xf32>
    %cst_5 = arith.constant 0.000000e+00 : f32
    %6 = vector.broadcast %cst_5 : f32 to vector<16x128xf32>
    %7 = arith.maximumf %5, %6 : vector<16x128xf32>
    %8 = arith.truncf %7 : vector<16x128xf32> to vector<16x128xbf16>
    %c0_6 = arith.constant 0 : index
    %c0_7 = arith.constant 0 : index
    %9 = vector.load %arg4[%c0_6, %c0_7] : memref<128x128xbf16, #tpu.memory_space<vmem>>, vector<128x128xbf16>
    %cst_8 = arith.constant dense<0.000000e+00> : vector<16x128xf32>
    %10 = tpu.matmul %8, %9, %cst_8 {dimension_numbers = #tpu.dot_dimension_numbers<[1], [0], [0], [1], [0, 0, 1, 1], [], []>} : vector<16x128xbf16>, vector<128x128xbf16>, vector<16x128xf32> -> vector<16x128xf32>
    %c0_9 = arith.constant 0 : index
    %c0_10 = arith.constant 0 : index
    %11 = vector.load %arg5[%c0_9, %c0_10] : memref<1x128xf32, #tpu.memory_space<vmem>>, vector<1x128xf32>
    %12 = vector.broadcast %11 : vector<1x128xf32> to vector<16x128xf32>
    %13 = arith.addf %10, %12 : vector<16x128xf32>
    %14 = arith.truncf %13 : vector<16x128xf32> to vector<16x128xbf16>
    %c0_11 = arith.constant 0 : index
    %c0_12 = arith.constant 0 : index
    %15 = vector.load %arg12[%c0_11, %c0_12] : memref<16x128xbf16, #tpu.memory_space<vmem>>, vector<16x128xbf16>
    tpu.vector_store %arg12[%c0_11, %c0_12], %14 {strides = array<i32>} : memref<16x128xbf16, #tpu.memory_space<vmem>>, vector<16x128xbf16>,
    %cst_13 = arith.constant 0.000000e+00 : f32
    %16 = vector.broadcast %cst_13 : f32 to vector<16x128xf32>
    %17 = arith.maximumf %13, %16 : vector<16x128xf32>
    %18 = arith.truncf %17 : vector<16x128xf32> to vector<16x128xbf16>
    %c0_14 = arith.constant 0 : index
    %c0_15 = arith.constant 0 : index
    %19 = vector.load %arg6[%c0_14, %c0_15] : memref<128x128xbf16, #tpu.memory_space<vmem>>, vector<128x128xbf16>
    %cst_16 = arith.constant dense<0.000000e+00> : vector<16x128xf32>
    %20 = tpu.matmul %18, %19, %cst_16 {dimension_numbers = #tpu.dot_dimension_numbers<[1], [0], [0], [1], [0, 0, 1, 1], [], []>} : vector<16x128xbf16>, vector<128x128xbf16>, vector<16x128xf32> -> vector<16x128xf32>
    %c0_17 = arith.constant 0 : index
    %c0_18 = arith.constant 0 : index
    %21 = vector.load %arg7[%c0_17, %c0_18] : memref<1x128xf32, #tpu.memory_space<vmem>>, vector<1x128xf32>
    %22 = vector.broadcast %21 : vector<1x128xf32> to vector<16x128xf32>
    %23 = arith.addf %20, %22 : vector<16x128xf32>
    %cst_19 = arith.constant 0.000000e+00 : f32
    %24 = vector.broadcast %cst_19 : f32 to vector<16x128xf32>
    %25 = arith.maximumf %23, %24 : vector<16x128xf32>
    %26 = arith.truncf %25 : vector<16x128xf32> to vector<16x128xbf16>
    %c0_20 = arith.constant 0 : index
    %c0_21 = arith.constant 0 : index
    %27 = vector.load %arg8[%c0_20, %c0_21] : memref<128x128xbf16, #tpu.memory_space<vmem>>, vector<128x128xbf16>
    %cst_22 = arith.constant dense<0.000000e+00> : vector<16x128xf32>
    %28 = tpu.matmul %26, %27, %cst_22 {dimension_numbers = #tpu.dot_dimension_numbers<[1], [0], [0], [1], [0, 0, 1, 1], [], []>} : vector<16x128xbf16>, vector<128x128xbf16>, vector<16x128xf32> -> vector<16x128xf32>
    %c0_23 = arith.constant 0 : index
    %c0_24 = arith.constant 0 : index
    %29 = vector.load %arg9[%c0_23, %c0_24] : memref<1x128xf32, #tpu.memory_space<vmem>>, vector<1x128xf32>
    %30 = vector.broadcast %29 : vector<1x128xf32> to vector<16x128xf32>
    %31 = arith.addf %28, %30 : vector<16x128xf32>
    %32 = arith.truncf %31 : vector<16x128xf32> to vector<16x128xbf16>
    %c0_25 = arith.constant 0 : index
    %c0_26 = arith.constant 0 : index
    %33 = vector.load %arg13[%c0_25, %c0_26] : memref<16x128xbf16, #tpu.memory_space<vmem>>, vector<16x128xbf16>
    tpu.vector_store %arg13[%c0_25, %c0_26], %32 {strides = array<i32>} : memref<16x128xbf16, #tpu.memory_space<vmem>>, vector<16x128xbf16>,
    %cst_27 = arith.constant 0.000000e+00 : f32
    %34 = vector.broadcast %cst_27 : f32 to vector<16x128xf32>
    %35 = arith.maximumf %31, %34 : vector<16x128xf32>
    %36 = arith.truncf %35 : vector<16x128xf32> to vector<16x128xbf16>
    %c0_28 = arith.constant 0 : index
    %c0_29 = arith.constant 0 : index
    %37 = vector.load %arg10[%c0_28, %c0_29] : memref<128x128xbf16, #tpu.memory_space<vmem>>, vector<128x128xbf16>
    %cst_30 = arith.constant dense<0.000000e+00> : vector<16x128xf32>
    %38 = tpu.matmul %36, %37, %cst_30 {dimension_numbers = #tpu.dot_dimension_numbers<[1], [0], [0], [1], [0, 0, 1, 1], [], []>} : vector<16x128xbf16>, vector<128x128xbf16>, vector<16x128xf32> -> vector<16x128xf32>
    %c0_31 = arith.constant 0 : index
    %c0_32 = arith.constant 0 : index
    %39 = vector.load %arg11[%c0_31, %c0_32] : memref<1x128xf32, #tpu.memory_space<vmem>>, vector<1x128xf32>
    %40 = vector.broadcast %39 : vector<1x128xf32> to vector<16x128xf32>
    %41 = arith.addf %38, %40 : vector<16x128xf32>
    %42 = arith.negf %41 : vector<16x128xf32>
    %43 = math.exp %42 : vector<16x128xf32>
    %cst_33 = arith.constant 1.000000e+00 : f32
    %44 = vector.broadcast %cst_33 : f32 to vector<16x128xf32>
    %45 = arith.addf %44, %43 : vector<16x128xf32>
    %46 = arith.divf %44, %45 : vector<16x128xf32>
    %c0_34 = arith.constant 0 : index
    %c0_35 = arith.constant 0 : index
    %47 = vector.load %arg14[%c0_34, %c0_35] : memref<16x128xf32, #tpu.memory_space<vmem>>, vector<16x128xf32>
    tpu.vector_store %arg14[%c0_34, %c0_35], %46 {strides = array<i32>} : memref<16x128xf32, #tpu.memory_space<vmem>>, vector<16x128xf32>,
    return
  }
  func.func @transform_0(%arg0: i32) -> (i32, i32) {
    %c0_i32 = arith.constant 0 : i32
    %c0_i32_0 = arith.constant 0 : i32
    return %arg0, %c0_i32 : i32, i32
  }
  func.func @transform_1(%arg0: i32) -> (i32, i32) {
    %c0_i32 = arith.constant 0 : i32
    %c0_i32_0 = arith.constant 0 : i32
    %c0_i32_1 = arith.constant 0 : i32
    return %c0_i32, %c0_i32_0 : i32, i32
  }
  func.func @transform_2(%arg0: i32) -> (i32, i32) {
    %c0_i32 = arith.constant 0 : i32
    %c0_i32_0 = arith.constant 0 : i32
    %c0_i32_1 = arith.constant 0 : i32
    return %c0_i32, %c0_i32_0 : i32, i32
  }
  func.func @transform_3(%arg0: i32) -> (i32, i32) {
    %c0_i32 = arith.constant 0 : i32
    %c0_i32_0 = arith.constant 0 : i32
    %c0_i32_1 = arith.constant 0 : i32
    return %c0_i32, %c0_i32_0 : i32, i32
  }
  func.func @transform_4(%arg0: i32) -> (i32, i32) {
    %c0_i32 = arith.constant 0 : i32
    %c0_i32_0 = arith.constant 0 : i32
    %c0_i32_1 = arith.constant 0 : i32
    return %c0_i32, %c0_i32_0 : i32, i32
  }
  func.func @transform_5(%arg0: i32) -> (i32, i32) {
    %c0_i32 = arith.constant 0 : i32
    %c0_i32_0 = arith.constant 0 : i32
    %c0_i32_1 = arith.constant 0 : i32
    return %c0_i32, %c0_i32_0 : i32, i32
  }
  func.func @transform_6(%arg0: i32) -> (i32, i32) {
    %c0_i32 = arith.constant 0 : i32
    %c0_i32_0 = arith.constant 0 : i32
    %c0_i32_1 = arith.constant 0 : i32
    return %c0_i32, %c0_i32_0 : i32, i32
  }
  func.func @transform_7(%arg0: i32) -> (i32, i32) {
    %c0_i32 = arith.constant 0 : i32
    %c0_i32_0 = arith.constant 0 : i32
    %c0_i32_1 = arith.constant 0 : i32
    return %c0_i32, %c0_i32_0 : i32, i32
  }
  func.func @transform_8(%arg0: i32) -> (i32, i32) {
    %c0_i32 = arith.constant 0 : i32
    %c0_i32_0 = arith.constant 0 : i32
    %c0_i32_1 = arith.constant 0 : i32
    return %c0_i32, %c0_i32_0 : i32, i32
  }
  func.func @transform_9(%arg0: i32) -> (i32, i32) {
    %c0_i32 = arith.constant 0 : i32
    %c0_i32_0 = arith.constant 0 : i32
    %c0_i32_1 = arith.constant 0 : i32
    return %c0_i32, %c0_i32_0 : i32, i32
  }
  func.func @transform_10(%arg0: i32) -> (i32, i32) {
    %c0_i32 = arith.constant 0 : i32
    %c0_i32_0 = arith.constant 0 : i32
    %c0_i32_1 = arith.constant 0 : i32
    return %c0_i32, %c0_i32_0 : i32, i32
  }
  func.func @transform_11(%arg0: i32) -> (i32, i32) {
    %c0_i32 = arith.constant 0 : i32
    %c0_i32_0 = arith.constant 0 : i32
    return %arg0, %c0_i32 : i32, i32
  }
  func.func @transform_12(%arg0: i32) -> (i32, i32) {
    %c0_i32 = arith.constant 0 : i32
    %c0_i32_0 = arith.constant 0 : i32
    return %arg0, %c0_i32 : i32, i32
  }
  func.func @transform_13(%arg0: i32) -> (i32, i32) {
    %c0_i32 = arith.constant 0 : i32
    %c0_i32_0 = arith.constant 0 : i32
    return %arg0, %c0_i32 : i32, i32
  }
}

</mosaic_0001>

<llo_original>
// kernel: tpu_custom_call.1
$region0: #{tpu_custom_call.1}
  #allocation0 [shape = 'u32[]', space=smem, size = 0x4, offset = 0x4, fixed_abs, tag = 'smem constant byte address 0x4 - core index']
  #allocation1 [shape = 'u32[144,128]{1,0:T(1,128)}', space=vmem, size = 0x12000, scoped, tag = 'internal scratch']
  %s0 = inlined_call_operand.hbm [shape: bf16[16,128], index: 0, kind: input, shape index: {}]
  %s1 = inlined_call_operand.hbm [shape: bf16[128,128], index: 1, kind: input, shape index: {}]
  %s2 = inlined_call_operand.vmem [shape: f32[1,128], index: 2, kind: input, shape index: {}]
  %s3 = inlined_call_operand.hbm [shape: bf16[128,128], index: 3, kind: input, shape index: {}]
  %s4 = inlined_call_operand.vmem [shape: f32[1,128], index: 4, kind: input, shape index: {}]
  %s5 = inlined_call_operand.hbm [shape: bf16[128,128], index: 5, kind: input, shape index: {}]
  %s6 = inlined_call_operand.vmem [shape: f32[1,128], index: 6, kind: input, shape index: {}]
  %s7 = inlined_call_operand.hbm [shape: bf16[128,128], index: 7, kind: input, shape index: {}]
  %s8 = inlined_call_operand.vmem [shape: f32[1,128], index: 8, kind: input, shape index: {}]
  %s9 = inlined_call_operand.hbm [shape: bf16[128,128], index: 9, kind: input, shape index: {}]
  %s10 = inlined_call_operand.vmem [shape: f32[1,128], index: 10, kind: input, shape index: {}]
  %s11 = inlined_call_operand.hbm [shape: bf16[16,128], index: 11, kind: output, shape index: {0}]
  %s12 = inlined_call_operand.hbm [shape: bf16[16,128], index: 12, kind: output, shape index: {1}]
  %s13 = inlined_call_operand.hbm [shape: f32[16,128], index: 13, kind: output, shape index: {2}]
  %14 = xla_tuple %s11, %s12, %s13
  %s15 = sld [smem:[#allocation0]]
  $region94: #{tpu_custom_call.1} parent=0
    _
  %s17 = ssub.s32 1, %s15
  %s18 = scalar_select 0, %s17, %s15
  $region1: #{tpu_custom_call.1} parent=0
    #allocation2 [shape = 'u8[4096]{0}', space=vmem, size = 0x1000, scoped, tag = 'input window, operand 0, single buffered']
    #allocation3 [shape = 's32[1]{0}', space=sflag, size = 0x4, scoped, tag = 'scoped memory for tpu_custom_call.1']
    #allocation4 [shape = 's32[1]{0}', space=sflag, size = 0x4, scoped, tag = 'scoped memory for tpu_custom_call.1']
    #allocation5 [shape = 'u8[32768]{0}', space=vmem, size = 0x8000, scoped, tag = 'input window, operand 1, single buffered']
    #allocation6 [shape = 's32[1]{0}', space=sflag, size = 0x4, scoped, tag = 'scoped memory for tpu_custom_call.1']
    #allocation7 [shape = 'u8[32768]{0}', space=vmem, size = 0x8000, scoped, tag = 'input window, operand 3, single buffered']
    #allocation8 [shape = 'u8[32768]{0}', space=vmem, size = 0x8000, scoped, tag = 'input window, operand 5, single buffered']
    #allocation9 [shape = 's32[1]{0}', space=sflag, size = 0x4, scoped, tag = 'scoped memory for tpu_custom_call.1']
    #allocation10 [shape = 'u8[32768]{0}', space=vmem, size = 0x8000, scoped, tag = 'input window, operand 7, single buffered']
    #allocation11 [shape = 'u8[32768]{0}', space=vmem, size = 0x8000, scoped, tag = 'input window, operand 9, single buffered']
    #allocation12 [shape = 's32[1]{0}', space=sflag, size = 0x4, scoped, tag = 'scoped memory for tpu_custom_call.1']
    #allocation13 [shape = 'u8[4096]{0}', space=vmem, size = 0x1000, scoped, tag = 'output window, operand 0, single buffered']
    #allocation14 [shape = 'u8[4096]{0}', space=vmem, size = 0x1000, scoped, tag = 'output window, operand 1, single buffered']
    #allocation15 [shape = 's32[1]{0}', space=sflag, size = 0x4, scoped, tag = 'scoped memory for tpu_custom_call.1']
    #allocation16 [shape = 'u8[8192]{0}', space=vmem, size = 0x2000, scoped, tag = 'output window, operand 2, single buffered']
    %19 = vsyncpa [#allocation3], 0
    %20 = vsyncpa [#allocation6], 0
    %21 = vsyncpa [#allocation9], 0
    %22 = vsyncpa [#allocation12], 0
    %23 = vsyncpa [#allocation4], 0
    %24 = vsyncpa [#allocation15], 0
    // Predicated region
    $region2: #{tpu_custom_call.1} parent=1 // pred_check
      _
    $region3: #{tpu_custom_call.1} parent=1 // pred_check_branch
      %26 = sbr.rel (0) target = $region5
    $region4: #{tpu_custom_call.1} parent=1 // pred_region
      %s28 = ssub.s32 128, 128
      %29 = vsyncadd [#allocation3], %s28
      %s30 = sshll.u32 [#allocation2], 4
      %s31 = int_to_ptr.vmem [resolvable:$true] %s30
      %36 = dma.hbm_to_vmem [thread:$0]  %s0, 128, %s31, [#allocation3], 64, 64, 4
    $region5: #{tpu_custom_call.1} parent=1 // pred_fallthru
      _
    // Predicated region
    $region6: #{tpu_custom_call.1} parent=1 // pred_check
      _
    $region7: #{tpu_custom_call.1} parent=1 // pred_check_branch
      %38 = sbr.rel (0) target = $region9
    $region8: #{tpu_custom_call.1} parent=1 // pred_region
      %s40 = ssub.s32 1024, 1024
      %41 = vsyncadd [#allocation6], %s40
      %s42 = sshll.u32 [#allocation5], 4
      %s43 = int_to_ptr.vmem [resolvable:$true] %s42
      %48 = dma.hbm_to_vmem [thread:$0]  %s1, 1024, %s43, [#allocation6], 64, 64, 4
    $region9: #{tpu_custom_call.1} parent=1 // pred_fallthru
      _
    // Predicated region
    $region10: #{tpu_custom_call.1} parent=1 // pred_check
      _
    $region11: #{tpu_custom_call.1} parent=1 // pred_check_branch
      %50 = sbr.rel (0) target = $region13
    $region12: #{tpu_custom_call.1} parent=1 // pred_region
      _
    $region13: #{tpu_custom_call.1} parent=1 // pred_fallthru
      _
    // Predicated region
    $region14: #{tpu_custom_call.1} parent=1 // pred_check
      _
    $region15: #{tpu_custom_call.1} parent=1 // pred_check_branch
      %52 = sbr.rel (0) target = $region17
    $region16: #{tpu_custom_call.1} parent=1 // pred_region
      %s54 = ssub.s32 1024, 1024
      %55 = vsyncadd [#allocation6], %s54
      %s56 = sshll.u32 [#allocation7], 4
      %s57 = int_to_ptr.vmem [resolvable:$true] %s56
      %62 = dma.hbm_to_vmem [thread:$0]  %s3, 1024, %s57, [#allocation6], 64, 64, 4
    $region17: #{tpu_custom_call.1} parent=1 // pred_fallthru
      _
    // Predicated region
    $region18: #{tpu_custom_call.1} parent=1 // pred_check
      _
    $region19: #{tpu_custom_call.1} parent=1 // pred_check_branch
      %64 = sbr.rel (0) target = $region21
    $region20: #{tpu_custom_call.1} parent=1 // pred_region
      _
    $region21: #{tpu_custom_call.1} parent=1 // pred_fallthru
      _
    // Predicated region
    $region22: #{tpu_custom_call.1} parent=1 // pred_check
      _
    $region23: #{tpu_custom_call.1} parent=1 // pred_check_branch
      %66 = sbr.rel (0) target = $region25
    $region24: #{tpu_custom_call.1} parent=1 // pred_region
      %s68 = ssub.s32 1024, 1024
      %69 = vsyncadd [#allocation9], %s68
      %s70 = sshll.u32 [#allocation8], 4
      %s71 = int_to_ptr.vmem [resolvable:$true] %s70
      %76 = dma.hbm_to_vmem [thread:$0]  %s5, 1024, %s71, [#allocation9], 64, 64, 4
    $region25: #{tpu_custom_call.1} parent=1 // pred_fallthru
      _
    // Predicated region
    $region26: #{tpu_custom_call.1} parent=1 // pred_check
      _
    $region27: #{tpu_custom_call.1} parent=1 // pred_check_branch
      %78 = sbr.rel (0) target = $region29
    $region28: #{tpu_custom_call.1} parent=1 // pred_region
      _
    $region29: #{tpu_custom_call.1} parent=1 // pred_fallthru
      _
    // Predicated region
    $region30: #{tpu_custom_call.1} parent=1 // pred_check
      _
    $region31: #{tpu_custom_call.1} parent=1 // pred_check_branch
      %80 = sbr.rel (0) target = $region33
    $region32: #{tpu_custom_call.1} parent=1 // pred_region
      %s82 = ssub.s32 1024, 1024
      %83 = vsyncadd [#allocation9], %s82
      %s84 = sshll.u32 [#allocation10], 4
      %s85 = int_to_ptr.vmem [resolvable:$true] %s84
      %90 = dma.hbm_to_vmem [thread:$0]  %s7, 1024, %s85, [#allocation9], 64, 64, 4
    $region33: #{tpu_custom_call.1} parent=1 // pred_fallthru
      _
    // Predicated region
    $region34: #{tpu_custom_call.1} parent=1 // pred_check
      _
    $region35: #{tpu_custom_call.1} parent=1 // pred_check_branch
      %92 = sbr.rel (0) target = $region37
    $region36: #{tpu_custom_call.1} parent=1 // pred_region
      _
    $region37: #{tpu_custom_call.1} parent=1 // pred_fallthru
      _
    // Predicated region
    $region38: #{tpu_custom_call.1} parent=1 // pred_check
      _
    $region39: #{tpu_custom_call.1} parent=1 // pred_check_branch
      %94 = sbr.rel (0) target = $region41
    $region40: #{tpu_custom_call.1} parent=1 // pred_region
      %s96 = ssub.s32 1024, 1024
      %97 = vsyncadd [#allocation12], %s96
      %s98 = sshll.u32 [#allocation11], 4
      %s99 = int_to_ptr.vmem [resolvable:$true] %s98
      %104 = dma.hbm_to_vmem [thread:$0]  %s9, 1024, %s99, [#allocation12], 64, 64, 4
    $region41: #{tpu_custom_call.1} parent=1 // pred_fallthru
      _
    // Predicated region
    $region42: #{tpu_custom_call.1} parent=1 // pred_check
      _
    $region43: #{tpu_custom_call.1} parent=1 // pred_check_branch
      %106 = sbr.rel (0) target = $region45
    $region44: #{tpu_custom_call.1} parent=1 // pred_region
      _
    $region45: #{tpu_custom_call.1} parent=1 // pred_fallthru
      _
    // Predicated region
    $region46: #{tpu_custom_call.1} parent=1 // pred_check
      _
    $region47: #{tpu_custom_call.1} parent=1 // pred_check_branch
      %108 = sbr.rel (0) target = $region49
    $region48: #{tpu_custom_call.1} parent=1 // pred_region
      %109 = dma.done [#allocation3], 128
    $region49: #{tpu_custom_call.1} parent=1 // pred_fallthru
      _
    // Predicated region
    $region50: #{tpu_custom_call.1} parent=1 // pred_check
      _
    $region51: #{tpu_custom_call.1} parent=1 // pred_check_branch
      %111 = sbr.rel (0) target = $region53
    $region52: #{tpu_custom_call.1} parent=1 // pred_region
      %112 = dma.done [#allocation6], 1024
    $region53: #{tpu_custom_call.1} parent=1 // pred_fallthru
      _
    // Predicated region
    $region54: #{tpu_custom_call.1} parent=1 // pred_check
      _
    $region55: #{tpu_custom_call.1} parent=1 // pred_check_branch
      %114 = sbr.rel (0) target = $region57
    $region56: #{tpu_custom_call.1} parent=1 // pred_region
      %115 = dma.done [#allocation6], 1024
    $region57: #{tpu_custom_call.1} parent=1 // pred_fallthru
      _
    // Predicated region
    $region58: #{tpu_custom_call.1} parent=1 // pred_check
      _
    $region59: #{tpu_custom_call.1} parent=1 // pred_check_branch
      %117 = sbr.rel (0) target = $region61
    $region60: #{tpu_custom_call.1} parent=1 // pred_region
      %118 = dma.done [#allocation9], 1024
    $region61: #{tpu_custom_call.1} parent=1 // pred_fallthru
      _
    // Predicated region
    $region62: #{tpu_custom_call.1} parent=1 // pred_check
      _
    $region63: #{tpu_custom_call.1} parent=1 // pred_check_branch
      %120 = sbr.rel (0) target = $region65
    $region64: #{tpu_custom_call.1} parent=1 // pred_region
      %121 = dma.done [#allocation9], 1024
    $region65: #{tpu_custom_call.1} parent=1 // pred_fallthru
      _
    // Predicated region
    $region66: #{tpu_custom_call.1} parent=1 // pred_check
      _
    $region67: #{tpu_custom_call.1} parent=1 // pred_check_branch
      %123 = sbr.rel (0) target = $region69
    $region68: #{tpu_custom_call.1} parent=1 // pred_region
      %124 = dma.done [#allocation12], 1024
    $region69: #{tpu_custom_call.1} parent=1 // pred_fallthru
      _
    %v126 = vld [vmem:[#allocation2] sm:$0xf]
    %v127 = vld [vmem:[#allocation2 + $0x4] sm:$0xf]
    %v128 = vld [vmem:[#allocation5] sm:$0xf]
    %v129 = vld [vmem:[#allocation5 + $0x4] sm:$0xf]
    %v130 = vld [vmem:[#allocation5 + $0x8] sm:$0xf]
    %v131 = vld [vmem:[#allocation5 + $0xc] sm:$0xf]
    %v132 = vld [vmem:[#allocation5 + $0x10] sm:$0xf]
    %v133 = vld [vmem:[#allocation5 + $0x14] sm:$0xf]
    %v134 = vld [vmem:[#allocation5 + $0x18] sm:$0xf]
    %v135 = vld [vmem:[#allocation5 + $0x1c] sm:$0xf]
    %v136 = vld [vmem:[#allocation5 + $0x20] sm:$0xf]
    %v137 = vld [vmem:[#allocation5 + $0x24] sm:$0xf]
    %v138 = vld [vmem:[#allocation5 + $0x28] sm:$0xf]
    %v139 = vld [vmem:[#allocation5 + $0x2c] sm:$0xf]
    %v140 = vld [vmem:[#allocation5 + $0x30] sm:$0xf]
    %v141 = vld [vmem:[#allocation5 + $0x34] sm:$0xf]
    %v142 = vld [vmem:[#allocation5 + $0x38] sm:$0xf]
    %v143 = vld [vmem:[#allocation5 + $0x3c] sm:$0xf]
    %v144 = vld [vmem:[%s2] sm:$0x1]
    %v146 = vlaneseq
    %v147 = vshrl.u32 %v146, 7
    %v148 = vsub.s32 0, %v147
    %v149 = vrot.slane %v144, %v148
    %v153 = vunpack.c.l.b16 %v126
    %v154 = vunpack.c.l.b16 %v127
    %v155 = vpack.c.b16 %v154, %v153
    %v173 = vunpack.c.l.b16 %v128
    %v174 = vunpack.c.l.b16 %v129
    %v175 = vunpack.c.l.b16 %v130
    %v176 = vunpack.c.l.b16 %v131
    %v177 = vunpack.c.l.b16 %v132
    %v178 = vunpack.c.l.b16 %v133
    %v179 = vunpack.c.l.b16 %v134
    %v180 = vunpack.c.l.b16 %v135
    %v181 = vunpack.c.l.b16 %v136
    %v182 = vunpack.c.l.b16 %v137
    %v183 = vunpack.c.l.b16 %v138
    %v184 = vunpack.c.l.b16 %v139
    %v185 = vunpack.c.l.b16 %v140
    %v186 = vunpack.c.l.b16 %v141
    %v187 = vunpack.c.l.b16 %v142
    %v188 = vunpack.c.l.b16 %v143
    %v189 = vpack.c.b16 %v174, %v173
    %v190 = vpack.c.b16 %v176, %v175
    %v191 = vpack.c.b16 %v178, %v177
    %v192 = vpack.c.b16 %v180, %v179
    %v193 = vpack.c.b16 %v182, %v181
    %v194 = vpack.c.b16 %v184, %v183
    %v195 = vpack.c.b16 %v186, %v185
    %v196 = vpack.c.b16 %v188, %v187
    %205 = vmatprep.subr.bf16.mxu0 0
    %206 = vmatpush1.bf16.msra.mxu0 %v189
    %207 = vmatprep.subr.bf16.mxu0 0
    %208 = vmatpush1.bf16.msra.mxu0 %v190
    %209 = vmatprep.subr.bf16.mxu0 0
    %210 = vmatpush1.bf16.msra.mxu0 %v191
    %211 = vmatprep.subr.bf16.mxu0 0
    %212 = vmatpush1.bf16.msra.mxu0 %v192
    %213 = vmatprep.subr.bf16.mxu0 0
    %214 = vmatpush1.bf16.msra.mxu0 %v193
    %215 = vmatprep.subr.bf16.mxu0 0
    %216 = vmatpush1.bf16.msra.mxu0 %v194
    %217 = vmatprep.subr.bf16.mxu0 0
    %218 = vmatpush1.bf16.msra.mxu0 %v195
    %219 = vmatprep.subr.bf16.mxu0 0
    %220 = vmatpush1.bf16.msra.mxu0 %v196
    %221 = vmatprep.subr.bf16.mxu0 0
    %222 = vmatpush1.bf16.msra.mxu0 0
    %223 = vmatprep.subr.bf16.mxu0 0
    %224 = vmatpush1.bf16.msra.mxu0 0
    %225 = vmatprep.subr.bf16.mxu0 0
    %226 = vmatpush1.bf16.msra.mxu0 0
    %227 = vmatprep.subr.bf16.mxu0 0
    %228 = vmatpush1.bf16.msra.mxu0 0
    %229 = vmatprep.subr.bf16.mxu0 0
    %230 = vmatpush1.bf16.msra.mxu0 0
    %231 = vmatprep.subr.bf16.mxu0 0
    %232 = vmatpush1.bf16.msra.mxu0 0
    %233 = vmatprep.subr.bf16.mxu0 0
    %234 = vmatpush1.bf16.msra.mxu0 0
    %235 = vmatprep.subr.bf16.mxu0 0
    %236 = vmatpush1.bf16.msra.mxu0 0
    %237 = vmatprep.mubr.bf16.mxu0 0
    %238 = vmatmul.mubr.bf16.gmra.mrb[0].mxu0 %v155
    %v239 = vpop.f32.mrb[0].mxu0
    %v240 = vadd.f32 %v149, %v239
    %v241 = vpop.f32.mrb[0].mxu0
    %v242 = vpop.f32.mrb[0].mxu0
    %v243 = vadd.f32 %v149, %v242
    %v244 = vpop.f32.mrb[0].mxu0
    %245 = vdwg.mxu0
    %v246 = vmax.f32 %v240, 0.0
    %v247 = vmax.f32 %v243, 0.0
    %v248 = vpack.c.bf16 %v247, %v246
    %v249 = vld [vmem:[#allocation7] sm:$0xf]
    %v250 = vld [vmem:[#allocation7 + $0x4] sm:$0xf]
    %v251 = vld [vmem:[#allocation7 + $0x8] sm:$0xf]
    %v252 = vld [vmem:[#allocation7 + $0xc] sm:$0xf]
    %v253 = vld [vmem:[#allocation7 + $0x10] sm:$0xf]
    %v254 = vld [vmem:[#allocation7 + $0x14] sm:$0xf]
    %v255 = vld [vmem:[#allocation7 + $0x18] sm:$0xf]
    %v256 = vld [vmem:[#allocation7 + $0x1c] sm:$0xf]
    %v257 = vld [vmem:[#allocation7 + $0x20] sm:$0xf]
    %v258 = vld [vmem:[#allocation7 + $0x24] sm:$0xf]
    %v259 = vld [vmem:[#allocation7 + $0x28] sm:$0xf]
    %v260 = vld [vmem:[#allocation7 + $0x2c] sm:$0xf]
    %v261 = vld [vmem:[#allocation7 + $0x30] sm:$0xf]
    %v262 = vld [vmem:[#allocation7 + $0x34] sm:$0xf]
    %v263 = vld [vmem:[#allocation7 + $0x38] sm:$0xf]
    %v264 = vld [vmem:[#allocation7 + $0x3c] sm:$0xf]
    %v265 = vld [vmem:[%s4] sm:$0x1]
    %v267 = vlaneseq
    %v268 = vshrl.u32 %v267, 7
    %v269 = vsub.s32 0, %v268
    %v270 = vrot.slane %v265, %v269
    %v288 = vunpack.c.l.b16 %v249
    %v289 = vunpack.c.l.b16 %v250
    %v290 = vunpack.c.l.b16 %v251
    %v291 = vunpack.c.l.b16 %v252
    %v292 = vunpack.c.l.b16 %v253
    %v293 = vunpack.c.l.b16 %v254
    %v294 = vunpack.c.l.b16 %v255
    %v295 = vunpack.c.l.b16 %v256
    %v296 = vunpack.c.l.b16 %v257
    %v297 = vunpack.c.l.b16 %v258
    %v298 = vunpack.c.l.b16 %v259
    %v299 = vunpack.c.l.b16 %v260
    %v300 = vunpack.c.l.b16 %v261
    %v301 = vunpack.c.l.b16 %v262
    %v302 = vunpack.c.l.b16 %v263
    %v303 = vunpack.c.l.b16 %v264
    %v304 = vpack.c.b16 %v289, %v288
    %v305 = vpack.c.b16 %v291, %v290
    %v306 = vpack.c.b16 %v293, %v292
    %v307 = vpack.c.b16 %v295, %v294
    %v308 = vpack.c.b16 %v297, %v296
    %v309 = vpack.c.b16 %v299, %v298
    %v310 = vpack.c.b16 %v301, %v300
    %v311 = vpack.c.b16 %v303, %v302
    %320 = vmatprep.subr.bf16.mxu0 0
    %321 = vmatpush1.bf16.msra.mxu0 %v304
    %322 = vmatprep.subr.bf16.mxu0 0
    %323 = vmatpush1.bf16.msra.mxu0 %v305
    %324 = vmatprep.subr.bf16.mxu0 0
    %325 = vmatpush1.bf16.msra.mxu0 %v306
    %326 = vmatprep.subr.bf16.mxu0 0
    %327 = vmatpush1.bf16.msra.mxu0 %v307
    %328 = vmatprep.subr.bf16.mxu0 0
    %329 = vmatpush1.bf16.msra.mxu0 %v308
    %330 = vmatprep.subr.bf16.mxu0 0
    %331 = vmatpush1.bf16.msra.mxu0 %v309
    %332 = vmatprep.subr.bf16.mxu0 0
    %333 = vmatpush1.bf16.msra.mxu0 %v310
    %334 = vmatprep.subr.bf16.mxu0 0
    %335 = vmatpush1.bf16.msra.mxu0 %v311
    %336 = vmatprep.subr.bf16.mxu0 0
    %337 = vmatpush1.bf16.msra.mxu0 0
    %338 = vmatprep.subr.bf16.mxu0 0
    %339 = vmatpush1.bf16.msra.mxu0 0
    %340 = vmatprep.subr.bf16.mxu0 0
    %341 = vmatpush1.bf16.msra.mxu0 0
    %342 = vmatprep.subr.bf16.mxu0 0
    %343 = vmatpush1.bf16.msra.mxu0 0
    %344 = vmatprep.subr.bf16.mxu0 0
    %345 = vmatpush1.bf16.msra.mxu0 0
    %346 = vmatprep.subr.bf16.mxu0 0
    %347 = vmatpush1.bf16.msra.mxu0 0
    %348 = vmatprep.subr.bf16.mxu0 0
    %349 = vmatpush1.bf16.msra.mxu0 0
    %350 = vmatprep.subr.bf16.mxu0 0
    %351 = vmatpush1.bf16.msra.mxu0 0
    %352 = vmatprep.mubr.bf16.mxu0 0
    %353 = vmatmul.mubr.bf16.gmra.mrb[0].mxu0 %v248
    %v354 = vpop.f32.mrb[0].mxu0
    %v355 = vadd.f32 %v270, %v354
    %v356 = vpop.f32.mrb[0].mxu0
    %v357 = vpop.f32.mrb[0].mxu0
    %v358 = vadd.f32 %v270, %v357
    %v359 = vpop.f32.mrb[0].mxu0
    %360 = vdwg.mxu0
    %v361 = vpack.c.bf16 %v358, %v355
    %v363 = vunpack.c.l.b16 %v361
    %v364 = vunpack.c.h.b16 %v361
    %v365 = vpack.c.b16 %v363, %v363
    %v366 = vpack.c.b16 %v364, %v364
    %369 = vst [vmem:[#allocation13] sm:$0xf] %v365
    %370 = vst [vmem:[#allocation13 + $0x4] sm:$0xf] %v366
    %v371 = vmax.f32 %v355, 0.0
    %v372 = vmax.f32 %v358, 0.0
    %v373 = vpack.c.bf16 %v372, %v371
    %v374 = vld [vmem:[#allocation8] sm:$0xf]
    %v375 = vld [vmem:[#allocation8 + $0x4] sm:$0xf]
    %v376 = vld [vmem:[#allocation8 + $0x8] sm:$0xf]
    %v377 = vld [vmem:[#allocation8 + $0xc] sm:$0xf]
    %v378 = vld [vmem:[#allocation8 + $0x10] sm:$0xf]
    %v379 = vld [vmem:[#allocation8 + $0x14] sm:$0xf]
    %v380 = vld [vmem:[#allocation8 + $0x18] sm:$0xf]
    %v381 = vld [vmem:[#allocation8 + $0x1c] sm:$0xf]
    %v382 = vld [vmem:[#allocation8 + $0x20] sm:$0xf]
    %v383 = vld [vmem:[#allocation8 + $0x24] sm:$0xf]
    %v384 = vld [vmem:[#allocation8 + $0x28] sm:$0xf]
    %v385 = vld [vmem:[#allocation8 + $0x2c] sm:$0xf]
    %v386 = vld [vmem:[#allocation8 + $0x30] sm:$0xf]
    %v387 = vld [vmem:[#allocation8 + $0x34] sm:$0xf]
    %v388 = vld [vmem:[#allocation8 + $0x38] sm:$0xf]
    %v389 = vld [vmem:[#allocation8 + $0x3c] sm:$0xf]
    %v390 = vld [vmem:[%s6] sm:$0x1]
    %v392 = vlaneseq
    %v393 = vshrl.u32 %v392, 7
    %v394 = vsub.s32 0, %v393
    %v395 = vrot.slane %v390, %v394
    %v413 = vunpack.c.l.b16 %v374
    %v414 = vunpack.c.l.b16 %v375
    %v415 = vunpack.c.l.b16 %v376
    %v416 = vunpack.c.l.b16 %v377
    %v417 = vunpack.c.l.b16 %v378
    %v418 = vunpack.c.l.b16 %v379
    %v419 = vunpack.c.l.b16 %v380
    %v420 = vunpack.c.l.b16 %v381
    %v421 = vunpack.c.l.b16 %v382
    %v422 = vunpack.c.l.b16 %v383
    %v423 = vunpack.c.l.b16 %v384
    %v424 = vunpack.c.l.b16 %v385
    %v425 = vunpack.c.l.b16 %v386
    %v426 = vunpack.c.l.b16 %v387
    %v427 = vunpack.c.l.b16 %v388
    %v428 = vunpack.c.l.b16 %v389
    %v429 = vpack.c.b16 %v414, %v413
    %v430 = vpack.c.b16 %v416, %v415
    %v431 = vpack.c.b16 %v418, %v417
    %v432 = vpack.c.b16 %v420, %v419
    %v433 = vpack.c.b16 %v422, %v421
    %v434 = vpack.c.b16 %v424, %v423
    %v435 = vpack.c.b16 %v426, %v425
    %v436 = vpack.c.b16 %v428, %v427
    %445 = vmatprep.subr.bf16.mxu0 0
    %446 = vmatpush1.bf16.msra.mxu0 %v429
    %447 = vmatprep.subr.bf16.mxu0 0
    %448 = vmatpush1.bf16.msra.mxu0 %v430
    %449 = vmatprep.subr.bf16.mxu0 0
    %450 = vmatpush1.bf16.msra.mxu0 %v431
    %451 = vmatprep.subr.bf16.mxu0 0
    %452 = vmatpush1.bf16.msra.mxu0 %v432
    %453 = vmatprep.subr.bf16.mxu0 0
    %454 = vmatpush1.bf16.msra.mxu0 %v433
    %455 = vmatprep.subr.bf16.mxu0 0
    %456 = vmatpush1.bf16.msra.mxu0 %v434
    %457 = vmatprep.subr.bf16.mxu0 0
    %458 = vmatpush1.bf16.msra.mxu0 %v435
    %459 = vmatprep.subr.bf16.mxu0 0
    %460 = vmatpush1.bf16.msra.mxu0 %v436
    %461 = vmatprep.subr.bf16.mxu0 0
    %462 = vmatpush1.bf16.msra.mxu0 0
    %463 = vmatprep.subr.bf16.mxu0 0
    %464 = vmatpush1.bf16.msra.mxu0 0
    %465 = vmatprep.subr.bf16.mxu0 0
    %466 = vmatpush1.bf16.msra.mxu0 0
    %467 = vmatprep.subr.bf16.mxu0 0
    %468 = vmatpush1.bf16.msra.mxu0 0
    %469 = vmatprep.subr.bf16.mxu0 0
    %470 = vmatpush1.bf16.msra.mxu0 0
    %471 = vmatprep.subr.bf16.mxu0 0
    %472 = vmatpush1.bf16.msra.mxu0 0
    %473 = vmatprep.subr.bf16.mxu0 0
    %474 = vmatpush1.bf16.msra.mxu0 0
    %475 = vmatprep.subr.bf16.mxu0 0
    %476 = vmatpush1.bf16.msra.mxu0 0
    %477 = vmatprep.mubr.bf16.mxu0 0
    %478 = vmatmul.mubr.bf16.gmra.mrb[0].mxu0 %v373
    %v479 = vpop.f32.mrb[0].mxu0
    %v480 = vadd.f32 %v395, %v479
    %v481 = vpop.f32.mrb[0].mxu0
    %v482 = vpop.f32.mrb[0].mxu0
    %v483 = vadd.f32 %v395, %v482
    %v484 = vpop.f32.mrb[0].mxu0
    %485 = vdwg.mxu0
    %v486 = vmax.f32 %v480, 0.0
    %v487 = vmax.f32 %v483, 0.0
    %v488 = vpack.c.bf16 %v487, %v486
    %v489 = vld [vmem:[#allocation10] sm:$0xf]
    %v490 = vld [vmem:[#allocation10 + $0x4] sm:$0xf]
    %v491 = vld [vmem:[#allocation10 + $0x8] sm:$0xf]
    %v492 = vld [vmem:[#allocation10 + $0xc] sm:$0xf]
    %v493 = vld [vmem:[#allocation10 + $0x10] sm:$0xf]
    %v494 = vld [vmem:[#allocation10 + $0x14] sm:$0xf]
    %v495 = vld [vmem:[#allocation10 + $0x18] sm:$0xf]
    %v496 = vld [vmem:[#allocation10 + $0x1c] sm:$0xf]
    %v497 = vld [vmem:[#allocation10 + $0x20] sm:$0xf]
    %v498 = vld [vmem:[#allocation10 + $0x24] sm:$0xf]
    %v499 = vld [vmem:[#allocation10 + $0x28] sm:$0xf]
    %v500 = vld [vmem:[#allocation10 + $0x2c] sm:$0xf]
    %v501 = vld [vmem:[#allocation10 + $0x30] sm:$0xf]
    %v502 = vld [vmem:[#allocation10 + $0x34] sm:$0xf]
    %v503 = vld [vmem:[#allocation10 + $0x38] sm:$0xf]
    %v504 = vld [vmem:[#allocation10 + $0x3c] sm:$0xf]
    %v505 = vld [vmem:[%s8] sm:$0x1]
    %v507 = vlaneseq
    %v508 = vshrl.u32 %v507, 7
    %v509 = vsub.s32 0, %v508
    %v510 = vrot.slane %v505, %v509
    %v528 = vunpack.c.l.b16 %v489
    %v529 = vunpack.c.l.b16 %v490
    %v530 = vunpack.c.l.b16 %v491
    %v531 = vunpack.c.l.b16 %v492
    %v532 = vunpack.c.l.b16 %v493
    %v533 = vunpack.c.l.b16 %v494
    %v534 = vunpack.c.l.b16 %v495
    %v535 = vunpack.c.l.b16 %v496
    %v536 = vunpack.c.l.b16 %v497
    %v537 = vunpack.c.l.b16 %v498
    %v538 = vunpack.c.l.b16 %v499
    %v539 = vunpack.c.l.b16 %v500
    %v540 = vunpack.c.l.b16 %v501
    %v541 = vunpack.c.l.b16 %v502
    %v542 = vunpack.c.l.b16 %v503
    %v543 = vunpack.c.l.b16 %v504
    %v544 = vpack.c.b16 %v529, %v528
    %v545 = vpack.c.b16 %v531, %v530
    %v546 = vpack.c.b16 %v533, %v532
    %v547 = vpack.c.b16 %v535, %v534
    %v548 = vpack.c.b16 %v537, %v536
    %v549 = vpack.c.b16 %v539, %v538
    %v550 = vpack.c.b16 %v541, %v540
    %v551 = vpack.c.b16 %v543, %v542
    %560 = vmatprep.subr.bf16.mxu0 0
    %561 = vmatpush1.bf16.msra.mxu0 %v544
    %562 = vmatprep.subr.bf16.mxu0 0
    %563 = vmatpush1.bf16.msra.mxu0 %v545
    %564 = vmatprep.subr.bf16.mxu0 0
    %565 = vmatpush1.bf16.msra.mxu0 %v546
    %566 = vmatprep.subr.bf16.mxu0 0
    %567 = vmatpush1.bf16.msra.mxu0 %v547
    %568 = vmatprep.subr.bf16.mxu0 0
    %569 = vmatpush1.bf16.msra.mxu0 %v548
    %570 = vmatprep.subr.bf16.mxu0 0
    %571 = vmatpush1.bf16.msra.mxu0 %v549
    %572 = vmatprep.subr.bf16.mxu0 0
    %573 = vmatpush1.bf16.msra.mxu0 %v550
    %574 = vmatprep.subr.bf16.mxu0 0
    %575 = vmatpush1.bf16.msra.mxu0 %v551
    %576 = vmatprep.subr.bf16.mxu0 0
    %577 = vmatpush1.bf16.msra.mxu0 0
    %578 = vmatprep.subr.bf16.mxu0 0
    %579 = vmatpush1.bf16.msra.mxu0 0
    %580 = vmatprep.subr.bf16.mxu0 0
    %581 = vmatpush1.bf16.msra.mxu0 0
    %582 = vmatprep.subr.bf16.mxu0 0
    %583 = vmatpush1.bf16.msra.mxu0 0
    %584 = vmatprep.subr.bf16.mxu0 0
    %585 = vmatpush1.bf16.msra.mxu0 0
    %586 = vmatprep.subr.bf16.mxu0 0
    %587 = vmatpush1.bf16.msra.mxu0 0
    %588 = vmatprep.subr.bf16.mxu0 0
    %589 = vmatpush1.bf16.msra.mxu0 0
    %590 = vmatprep.subr.bf16.mxu0 0
    %591 = vmatpush1.bf16.msra.mxu0 0
    %592 = vmatprep.mubr.bf16.mxu0 0
    %593 = vmatmul.mubr.bf16.gmra.mrb[0].mxu0 %v488
    %v594 = vpop.f32.mrb[0].mxu0
    %v595 = vadd.f32 %v510, %v594
    %v596 = vpop.f32.mrb[0].mxu0
    %v597 = vpop.f32.mrb[0].mxu0
    %v598 = vadd.f32 %v510, %v597
    %v599 = vpop.f32.mrb[0].mxu0
    %600 = vdwg.mxu0
    %v601 = vpack.c.bf16 %v598, %v595
    %v603 = vunpack.c.l.b16 %v601
    %v604 = vunpack.c.h.b16 %v601
    %v605 = vpack.c.b16 %v603, %v603
    %v606 = vpack.c.b16 %v604, %v604
    %609 = vst [vmem:[#allocation14] sm:$0xf] %v605
    %610 = vst [vmem:[#allocation14 + $0x4] sm:$0xf] %v606
    %v611 = vmax.f32 %v595, 0.0
    %v612 = vmax.f32 %v598, 0.0
    %v613 = vpack.c.bf16 %v612, %v611
    %v614 = vld [vmem:[#allocation11] sm:$0xf]
    %v615 = vld [vmem:[#allocation11 + $0x4] sm:$0xf]
    %v616 = vld [vmem:[#allocation11 + $0x8] sm:$0xf]
    %v617 = vld [vmem:[#allocation11 + $0xc] sm:$0xf]
    %v618 = vld [vmem:[#allocation11 + $0x10] sm:$0xf]
    %v619 = vld [vmem:[#allocation11 + $0x14] sm:$0xf]
    %v620 = vld [vmem:[#allocation11 + $0x18] sm:$0xf]
    %v621 = vld [vmem:[#allocation11 + $0x1c] sm:$0xf]
    %v622 = vld [vmem:[#allocation11 + $0x20] sm:$0xf]
    %v623 = vld [vmem:[#allocation11 + $0x24] sm:$0xf]
    %v624 = vld [vmem:[#allocation11 + $0x28] sm:$0xf]
    %v625 = vld [vmem:[#allocation11 + $0x2c] sm:$0xf]
    %v626 = vld [vmem:[#allocation11 + $0x30] sm:$0xf]
    %v627 = vld [vmem:[#allocation11 + $0x34] sm:$0xf]
    %v628 = vld [vmem:[#allocation11 + $0x38] sm:$0xf]
    %v629 = vld [vmem:[#allocation11 + $0x3c] sm:$0xf]
    %v630 = vld [vmem:[%s10] sm:$0x1]
    %v632 = vlaneseq
    %v633 = vshrl.u32 %v632, 7
    %v634 = vsub.s32 0, %v633
    %v635 = vrot.slane %v630, %v634
    %v653 = vunpack.c.l.b16 %v614
    %v654 = vunpack.c.l.b16 %v615
    %v655 = vunpack.c.l.b16 %v616
    %v656 = vunpack.c.l.b16 %v617
    %v657 = vunpack.c.l.b16 %v618
    %v658 = vunpack.c.l.b16 %v619
    %v659 = vunpack.c.l.b16 %v620
    %v660 = vunpack.c.l.b16 %v621
    %v661 = vunpack.c.l.b16 %v622
    %v662 = vunpack.c.l.b16 %v623
    %v663 = vunpack.c.l.b16 %v624
    %v664 = vunpack.c.l.b16 %v625
    %v665 = vunpack.c.l.b16 %v626
    %v666 = vunpack.c.l.b16 %v627
    %v667 = vunpack.c.l.b16 %v628
    %v668 = vunpack.c.l.b16 %v629
    %v669 = vpack.c.b16 %v654, %v653
    %v670 = vpack.c.b16 %v656, %v655
    %v671 = vpack.c.b16 %v658, %v657
    %v672 = vpack.c.b16 %v660, %v659
    %v673 = vpack.c.b16 %v662, %v661
    %v674 = vpack.c.b16 %v664, %v663
    %v675 = vpack.c.b16 %v666, %v665
    %v676 = vpack.c.b16 %v668, %v667
    %685 = vmatprep.subr.bf16.mxu0 0
    %686 = vmatpush1.bf16.msra.mxu0 %v669
    %687 = vmatprep.subr.bf16.mxu0 0
    %688 = vmatpush1.bf16.msra.mxu0 %v670
    %689 = vmatprep.subr.bf16.mxu0 0
    %690 = vmatpush1.bf16.msra.mxu0 %v671
    %691 = vmatprep.subr.bf16.mxu0 0
    %692 = vmatpush1.bf16.msra.mxu0 %v672
    %693 = vmatprep.subr.bf16.mxu0 0
    %694 = vmatpush1.bf16.msra.mxu0 %v673
    %695 = vmatprep.subr.bf16.mxu0 0
    %696 = vmatpush1.bf16.msra.mxu0 %v674
    %697 = vmatprep.subr.bf16.mxu0 0
    %698 = vmatpush1.bf16.msra.mxu0 %v675
    %699 = vmatprep.subr.bf16.mxu0 0
    %700 = vmatpush1.bf16.msra.mxu0 %v676
    %701 = vmatprep.subr.bf16.mxu0 0
    %702 = vmatpush1.bf16.msra.mxu0 0
    %703 = vmatprep.subr.bf16.mxu0 0
    %704 = vmatpush1.bf16.msra.mxu0 0
    %705 = vmatprep.subr.bf16.mxu0 0
    %706 = vmatpush1.bf16.msra.mxu0 0
    %707 = vmatprep.subr.bf16.mxu0 0
    %708 = vmatpush1.bf16.msra.mxu0 0
    %709 = vmatprep.subr.bf16.mxu0 0
    %710 = vmatpush1.bf16.msra.mxu0 0
    %711 = vmatprep.subr.bf16.mxu0 0
    %712 = vmatpush1.bf16.msra.mxu0 0
    %713 = vmatprep.subr.bf16.mxu0 0
    %714 = vmatpush1.bf16.msra.mxu0 0
    %715 = vmatprep.subr.bf16.mxu0 0
    %716 = vmatpush1.bf16.msra.mxu0 0
    %717 = vmatprep.mubr.bf16.mxu0 0
    %718 = vmatmul.mubr.bf16.gmra.mrb[0].mxu0 %v613
    %v719 = vpop.f32.mrb[0].mxu0
    %v720 = vadd.f32 %v635, %v719
    %v721 = vpop.f32.mrb[0].mxu0
    %v722 = vpop.f32.mrb[0].mxu0
    %v723 = vadd.f32 %v635, %v722
    %v724 = vpop.f32.mrb[0].mxu0
    %725 = vdwg.mxu0
    %v726 = vxor.u32 %v720, 2147483648
    %v727 = vxor.u32 %v723, 2147483648
    %v728 = vmul.f32 %v726, 1.442695
    %v729 = vpow.pop %v728
    %v730 = vmul.f32 %v727, 1.442695
    %v731 = vpow.pop %v730
    %v732 = vadd.f32 %v729, 1.0
    %v733 = vadd.f32 %v731, 1.0
    %v734 = vrcp.pop %v732
    %v735 = vmul.f32 1.0, %v734
    %v736 = vrcp.pop %v733
    %v737 = vmul.f32 1.0, %v736
    %738 = vst [vmem:[#allocation16] sm:$0xff] %v735
    %739 = vst [vmem:[#allocation16 + $0x8] sm:$0xff] %v737
    // Predicated region
    $region70: #{tpu_custom_call.1} parent=1 // pred_check
      _
    $region71: #{tpu_custom_call.1} parent=1 // pred_check_branch
      %741 = sbr.rel (0) target = $region73
    $region72: #{tpu_custom_call.1} parent=1 // pred_region
      %s743 = ssub.s32 128, 128
      %744 = vsyncadd [#allocation4], %s743
      %s745 = sshll.u32 [#allocation13], 4
      %s746 = int_to_ptr.vmem [resolvable:$true] %s745
      %751 = dma.vmem_to_hbm [thread:$0]  %s746, 128, %s11, [#allocation4], 64, 64, 4
    $region73: #{tpu_custom_call.1} parent=1 // pred_fallthru
      _
    // Predicated region
    $region74: #{tpu_custom_call.1} parent=1 // pred_check
      _
    $region75: #{tpu_custom_call.1} parent=1 // pred_check_branch
      %753 = sbr.rel (0) target = $region77
    $region76: #{tpu_custom_call.1} parent=1 // pred_region
      %s755 = ssub.s32 128, 128
      %756 = vsyncadd [#allocation15], %s755
      %s757 = sshll.u32 [#allocation14], 4
      %s758 = int_to_ptr.vmem [resolvable:$true] %s757
      %763 = dma.vmem_to_hbm [thread:$0]  %s758, 128, %s12, [#allocation15], 64, 64, 4
    $region77: #{tpu_custom_call.1} parent=1 // pred_fallthru
      _
    // Predicated region
    $region78: #{tpu_custom_call.1} parent=1 // pred_check
      _
    $region79: #{tpu_custom_call.1} parent=1 // pred_check_branch
      %765 = sbr.rel (0) target = $region81
    $region80: #{tpu_custom_call.1} parent=1 // pred_region
      %s767 = ssub.s32 256, 256
      %768 = vsyncadd [#allocation15], %s767
      %s769 = sshll.u32 [#allocation16], 4
      %s770 = int_to_ptr.vmem [resolvable:$true] %s769
      %775 = dma.vmem_to_hbm [thread:$0]  %s770, 256, %s13, [#allocation15], 128, 128, 8
    $region81: #{tpu_custom_call.1} parent=1 // pred_fallthru
      _
    // Predicated region
    $region82: #{tpu_custom_call.1} parent=1 // pred_check
      _
    $region83: #{tpu_custom_call.1} parent=1 // pred_check_branch
      %777 = sbr.rel (0) target = $region85
    $region84: #{tpu_custom_call.1} parent=1 // pred_region
      %778 = dma.done [#allocation4], 128
    $region85: #{tpu_custom_call.1} parent=1 // pred_fallthru
      _
    // Predicated region
    $region86: #{tpu_custom_call.1} parent=1 // pred_check
      _
    $region87: #{tpu_custom_call.1} parent=1 // pred_check_branch
      %780 = sbr.rel (0) target = $region89
    $region88: #{tpu_custom_call.1} parent=1 // pred_region
      %781 = dma.done [#allocation15], 128
    $region89: #{tpu_custom_call.1} parent=1 // pred_fallthru
      _
    // Predicated region
    $region90: #{tpu_custom_call.1} parent=1 // pred_check
      _
    $region91: #{tpu_custom_call.1} parent=1 // pred_check_branch
      %783 = sbr.rel (0) target = $region93
    $region92: #{tpu_custom_call.1} parent=1 // pred_region
      %784 = dma.done [#allocation15], 256
    $region93: #{tpu_custom_call.1} parent=1 // pred_fallthru
      _
    %785 = vsyncpa [#allocation3], 1
    %786 = vsyncpa [#allocation6], 1
    %787 = vsyncpa [#allocation9], 1
    %788 = vsyncpa [#allocation12], 1
    %789 = vsyncpa [#allocation4], 1
    %790 = vsyncpa [#allocation15], 1

// kernel: tpu_custom_call.1
$region0: #{tpu_custom_call.1}
  #allocation0 [shape = 'u32[]', space=smem, size = 0x4, offset = 0x4, fixed_abs, tag = 'smem constant byte address 0x4 - core index']
  #allocation1 [shape = 'u32[144,128]{1,0:T(1,128)}', space=vmem, size = 0x12000, scoped, tag = 'internal scratch']
  %s0 = inlined_call_operand.hbm [shape: bf16[16,128], index: 0, kind: input, shape index: {}]
  %s1 = inlined_call_operand.hbm [shape: bf16[128,128], index: 1, kind: input, shape index: {}]
  %s2 = inlined_call_operand.vmem [shape: f32[1,128], index: 2, kind: input, shape index: {}]
  %s3 = inlined_call_operand.hbm [shape: bf16[128,128], index: 3, kind: input, shape index: {}]
  %s4 = inlined_call_operand.vmem [shape: f32[1,128], index: 4, kind: input, shape index: {}]
  %s5 = inlined_call_operand.hbm [shape: bf16[128,128], index: 5, kind: input, shape index: {}]
  %s6 = inlined_call_operand.vmem [shape: f32[1,128], index: 6, kind: input, shape index: {}]
  %s7 = inlined_call_operand.hbm [shape: bf16[128,128], index: 7, kind: input, shape index: {}]
  %s8 = inlined_call_operand.vmem [shape: f32[1,128], index: 8, kind: input, shape index: {}]
  %s9 = inlined_call_operand.hbm [shape: bf16[128,128], index: 9, kind: input, shape index: {}]
  %s10 = inlined_call_operand.vmem [shape: f32[1,128], index: 10, kind: input, shape index: {}]
  %s11 = inlined_call_operand.hbm [shape: bf16[16,128], index: 11, kind: output, shape index: {0}]
  %s12 = inlined_call_operand.hbm [shape: bf16[16,128], index: 12, kind: output, shape index: {1}]
  %s13 = inlined_call_operand.hbm [shape: f32[16,128], index: 13, kind: output, shape index: {2}]
  %14 = xla_tuple %s11, %s12, %s13
  %s15 = sld [smem:[#allocation0]]
  $region94: #{tpu_custom_call.1} parent=0
    _
  %s17 = ssub.s32 1, %s15
  %s18 = scalar_select 0, %s17, %s15
  $region1: #{tpu_custom_call.1} parent=0
    #allocation2 [shape = 'u8[4096]{0}', space=vmem, size = 0x1000, scoped, tag = 'input window, operand 0, single buffered']
    #allocation3 [shape = 's32[1]{0}', space=sflag, size = 0x4, scoped, tag = 'scoped memory for tpu_custom_call.1']
    #allocation4 [shape = 's32[1]{0}', space=sflag, size = 0x4, scoped, tag = 'scoped memory for tpu_custom_call.1']
    #allocation5 [shape = 'u8[32768]{0}', space=vmem, size = 0x8000, scoped, tag = 'input window, operand 1, single buffered']
    #allocation6 [shape = 's32[1]{0}', space=sflag, size = 0x4, scoped, tag = 'scoped memory for tpu_custom_call.1']
    #allocation7 [shape = 'u8[32768]{0}', space=vmem, size = 0x8000, scoped, tag = 'input window, operand 3, single buffered']
    #allocation8 [shape = 'u8[32768]{0}', space=vmem, size = 0x8000, scoped, tag = 'input window, operand 5, single buffered']
    #allocation9 [shape = 's32[1]{0}', space=sflag, size = 0x4, scoped, tag = 'scoped memory for tpu_custom_call.1']
    #allocation10 [shape = 'u8[32768]{0}', space=vmem, size = 0x8000, scoped, tag = 'input window, operand 7, single buffered']
    #allocation11 [shape = 'u8[32768]{0}', space=vmem, size = 0x8000, scoped, tag = 'input window, operand 9, single buffered']
    #allocation12 [shape = 's32[1]{0}', space=sflag, size = 0x4, scoped, tag = 'scoped memory for tpu_custom_call.1']
    #allocation13 [shape = 'u8[4096]{0}', space=vmem, size = 0x1000, scoped, tag = 'output window, operand 0, single buffered']
    #allocation14 [shape = 'u8[4096]{0}', space=vmem, size = 0x1000, scoped, tag = 'output window, operand 1, single buffered']
    #allocation15 [shape = 's32[1]{0}', space=sflag, size = 0x4, scoped, tag = 'scoped memory for tpu_custom_call.1']
    #allocation16 [shape = 'u8[8192]{0}', space=vmem, size = 0x2000, scoped, tag = 'output window, operand 2, single buffered']
    %19 = vsyncpa [#allocation3], 0
    %20 = vsyncpa [#allocation6], 0
    %21 = vsyncpa [#allocation9], 0
    %22 = vsyncpa [#allocation12], 0
    %23 = vsyncpa [#allocation4], 0
    %24 = vsyncpa [#allocation15], 0
    // Predicated region
    $region2: #{tpu_custom_call.1} parent=1 // pred_check
      _
    $region3: #{tpu_custom_call.1} parent=1 // pred_check_branch
      %26 = sbr.rel (0) target = $region5
    $region4: #{tpu_custom_call.1} parent=1 // pred_region
      %s28 = ssub.s32 128, 128
      %29 = vsyncadd [#allocation3], %s28
      %s30 = sshll.u32 [#allocation2], 4
      %s31 = int_to_ptr.vmem [resolvable:$true] %s30
      %36 = dma.hbm_to_vmem [thread:$0]  %s0, 128, %s31, [#allocation3], 64, 64, 4
    $region5: #{tpu_custom_call.1} parent=1 // pred_fallthru
      _
    // Predicated region
    $region6: #{tpu_custom_call.1} parent=1 // pred_check
      _
    $region7: #{tpu_custom_call.1} parent=1 // pred_check_branch
      %38 = sbr.rel (0) target = $region9
    $region8: #{tpu_custom_call.1} parent=1 // pred_region
      %s40 = ssub.s32 1024, 1024
      %41 = vsyncadd [#allocation6], %s40
      %s42 = sshll.u32 [#allocation5], 4
      %s43 = int_to_ptr.vmem [resolvable:$true] %s42
      %48 = dma.hbm_to_vmem [thread:$0]  %s1, 1024, %s43, [#allocation6], 64, 64, 4
    $region9: #{tpu_custom_call.1} parent=1 // pred_fallthru
      _
    // Predicated region
    $region10: #{tpu_custom_call.1} parent=1 // pred_check
      _
    $region11: #{tpu_custom_call.1} parent=1 // pred_check_branch
      %50 = sbr.rel (0) target = $region13
    $region12: #{tpu_custom_call.1} parent=1 // pred_region
      _
    $region13: #{tpu_custom_call.1} parent=1 // pred_fallthru
      _
    // Predicated region
    $region14: #{tpu_custom_call.1} parent=1 // pred_check
      _
    $region15: #{tpu_custom_call.1} parent=1 // pred_check_branch
      %52 = sbr.rel (0) target = $region17
    $region16: #{tpu_custom_call.1} parent=1 // pred_region
      %s54 = ssub.s32 1024, 1024
      %55 = vsyncadd [#allocation6], %s54
      %s56 = sshll.u32 [#allocation7], 4
      %s57 = int_to_ptr.vmem [resolvable:$true] %s56
      %62 = dma.hbm_to_vmem [thread:$0]  %s3, 1024, %s57, [#allocation6], 64, 64, 4
    $region17: #{tpu_custom_call.1} parent=1 // pred_fallthru
      _
    // Predicated region
    $region18: #{tpu_custom_call.1} parent=1 // pred_check
      _
    $region19: #{tpu_custom_call.1} parent=1 // pred_check_branch
      %64 = sbr.rel (0) target = $region21
    $region20: #{tpu_custom_call.1} parent=1 // pred_region
      _
    $region21: #{tpu_custom_call.1} parent=1 // pred_fallthru
      _
    // Predicated region
    $region22: #{tpu_custom_call.1} parent=1 // pred_check
      _
    $region23: #{tpu_custom_call.1} parent=1 // pred_check_branch
      %66 = sbr.rel (0) target = $region25
    $region24: #{tpu_custom_call.1} parent=1 // pred_region
      %s68 = ssub.s32 1024, 1024
      %69 = vsyncadd [#allocation9], %s68
      %s70 = sshll.u32 [#allocation8], 4
      %s71 = int_to_ptr.vmem [resolvable:$true] %s70
      %76 = dma.hbm_to_vmem [thread:$0]  %s5, 1024, %s71, [#allocation9], 64, 64, 4
    $region25: #{tpu_custom_call.1} parent=1 // pred_fallthru
      _
    // Predicated region
    $region26: #{tpu_custom_call.1} parent=1 // pred_check
      _
    $region27: #{tpu_custom_call.1} parent=1 // pred_check_branch
      %78 = sbr.rel (0) target = $region29
    $region28: #{tpu_custom_call.1} parent=1 // pred_region
      _
    $region29: #{tpu_custom_call.1} parent=1 // pred_fallthru
      _
    // Predicated region
    $region30: #{tpu_custom_call.1} parent=1 // pred_check
      _
    $region31: #{tpu_custom_call.1} parent=1 // pred_check_branch
      %80 = sbr.rel (0) target = $region33
    $region32: #{tpu_custom_call.1} parent=1 // pred_region
      %s82 = ssub.s32 1024, 1024
      %83 = vsyncadd [#allocation9], %s82
      %s84 = sshll.u32 [#allocation10], 4
      %s85 = int_to_ptr.vmem [resolvable:$true] %s84
      %90 = dma.hbm_to_vmem [thread:$0]  %s7, 1024, %s85, [#allocation9], 64, 64, 4
    $region33: #{tpu_custom_call.1} parent=1 // pred_fallthru
      _
    // Predicated region
    $region34: #{tpu_custom_call.1} parent=1 // pred_check
      _
    $region35: #{tpu_custom_call.1} parent=1 // pred_check_branch
      %92 = sbr.rel (0) target = $region37
    $region36: #{tpu_custom_call.1} parent=1 // pred_region
      _
    $region37: #{tpu_custom_call.1} parent=1 // pred_fallthru
      _
    // Predicated region
    $region38: #{tpu_custom_call.1} parent=1 // pred_check
      _
    $region39: #{tpu_custom_call.1} parent=1 // pred_check_branch
      %94 = sbr.rel (0) target = $region41
    $region40: #{tpu_custom_call.1} parent=1 // pred_region
      %s96 = ssub.s32 1024, 1024
      %97 = vsyncadd [#allocation12], %s96
      %s98 = sshll.u32 [#allocation11], 4
      %s99 = int_to_ptr.vmem [resolvable:$true] %s98
      %104 = dma.hbm_to_vmem [thread:$0]  %s9, 1024, %s99, [#allocation12], 64, 64, 4
    $region41: #{tpu_custom_call.1} parent=1 // pred_fallthru
      _
    // Predicated region
    $region42: #{tpu_custom_call.1} parent=1 // pred_check
      _
    $region43: #{tpu_custom_call.1} parent=1 // pred_check_branch
      %106 = sbr.rel (0) target = $region45
    $region44: #{tpu_custom_call.1} parent=1 // pred_region
      _
    $region45: #{tpu_custom_call.1} parent=1 // pred_fallthru
      _
    // Predicated region
    $region46: #{tpu_custom_call.1} parent=1 // pred_check
      _
    $region47: #{tpu_custom_call.1} parent=1 // pred_check_branch
      %108 = sbr.rel (0) target = $region49
    $region48: #{tpu_custom_call.1} parent=1 // pred_region
      %109 = dma.done [#allocation3], 128
    $region49: #{tpu_custom_call.1} parent=1 // pred_fallthru
      _
    // Predicated region
    $region50: #{tpu_custom_call.1} parent=1 // pred_check
      _
    $region51: #{tpu_custom_call.1} parent=1 // pred_check_branch
      %111 = sbr.rel (0) target = $region53
    $region52: #{tpu_custom_call.1} parent=1 // pred_region
      %112 = dma.done [#allocation6], 1024
    $region53: #{tpu_custom_call.1} parent=1 // pred_fallthru
      _
    // Predicated region
    $region54: #{tpu_custom_call.1} parent=1 // pred_check
      _
    $region55: #{tpu_custom_call.1} parent=1 // pred_check_branch
      %114 = sbr.rel (0) target = $region57
    $region56: #{tpu_custom_call.1} parent=1 // pred_region
      %115 = dma.done [#allocation6], 1024
    $region57: #{tpu_custom_call.1} parent=1 // pred_fallthru
      _
    // Predicated region
    $region58: #{tpu_custom_call.1} parent=1 // pred_check
      _
    $region59: #{tpu_custom_call.1} parent=1 // pred_check_branch
      %117 = sbr.rel (0) target = $region61
    $region60: #{tpu_custom_call.1} parent=1 // pred_region
      %118 = dma.done [#allocation9], 1024
    $region61: #{tpu_custom_call.1} parent=1 // pred_fallthru
      _
    // Predicated region
    $region62: #{tpu_custom_call.1} parent=1 // pred_check
      _
    $region63: #{tpu_custom_call.1} parent=1 // pred_check_branch
      %120 = sbr.rel (0) target = $region65
    $region64: #{tpu_custom_call.1} parent=1 // pred_region
      %121 = dma.done [#allocation9], 1024
    $region65: #{tpu_custom_call.1} parent=1 // pred_fallthru
      _
    // Predicated region
    $region66: #{tpu_custom_call.1} parent=1 // pred_check
      _
    $region67: #{tpu_custom_call.1} parent=1 // pred_check_branch
      %123 = sbr.rel (0) target = $region69
    $region68: #{tpu_custom_call.1} parent=1 // pred_region
      %124 = dma.done [#allocation12], 1024
    $region69: #{tpu_custom_call.1} parent=1 // pred_fallthru
      _
    %v126 = vld [vmem:[#allocation2] sm:$0xf]
    %v127 = vld [vmem:[#allocation2 + $0x4] sm:$0xf]
    %v128 = vld [vmem:[#allocation5] sm:$0xf]
    %v129 = vld [vmem:[#allocation5 + $0x4] sm:$0xf]
    %v130 = vld [vmem:[#allocation5 + $0x8] sm:$0xf]
    %v131 = vld [vmem:[#allocation5 + $0xc] sm:$0xf]
    %v132 = vld [vmem:[#allocation5 + $0x10] sm:$0xf]
    %v133 = vld [vmem:[#allocation5 + $0x14] sm:$0xf]
    %v134 = vld [vmem:[#allocation5 + $0x18] sm:$0xf]
    %v135 = vld [vmem:[#allocation5 + $0x1c] sm:$0xf]
    %v136 = vld [vmem:[#allocation5 + $0x20] sm:$0xf]
    %v137 = vld [vmem:[#allocation5 + $0x24] sm:$0xf]
    %v138 = vld [vmem:[#allocation5 + $0x28] sm:$0xf]
    %v139 = vld [vmem:[#allocation5 + $0x2c] sm:$0xf]
    %v140 = vld [vmem:[#allocation5 + $0x30] sm:$0xf]
    %v141 = vld [vmem:[#allocation5 + $0x34] sm:$0xf]
    %v142 = vld [vmem:[#allocation5 + $0x38] sm:$0xf]
    %v143 = vld [vmem:[#allocation5 + $0x3c] sm:$0xf]
    %v144 = vld [vmem:[%s2] sm:$0x1]
    %v146 = vlaneseq
    %v147 = vshrl.u32 %v146, 7
    %v148 = vsub.s32 0, %v147
    %v149 = vrot.slane %v144, %v148
    %v153 = vunpack.c.l.b16 %v126
    %v154 = vunpack.c.l.b16 %v127
    %v155 = vpack.c.b16 %v154, %v153
    %v173 = vunpack.c.l.b16 %v128
    %v174 = vunpack.c.l.b16 %v129
    %v175 = vunpack.c.l.b16 %v130
    %v176 = vunpack.c.l.b16 %v131
    %v177 = vunpack.c.l.b16 %v132
    %v178 = vunpack.c.l.b16 %v133
    %v179 = vunpack.c.l.b16 %v134
    %v180 = vunpack.c.l.b16 %v135
    %v181 = vunpack.c.l.b16 %v136
    %v182 = vunpack.c.l.b16 %v137
    %v183 = vunpack.c.l.b16 %v138
    %v184 = vunpack.c.l.b16 %v139
    %v185 = vunpack.c.l.b16 %v140
    %v186 = vunpack.c.l.b16 %v141
    %v187 = vunpack.c.l.b16 %v142
    %v188 = vunpack.c.l.b16 %v143
    %v189 = vpack.c.b16 %v174, %v173
    %v190 = vpack.c.b16 %v176, %v175
    %v191 = vpack.c.b16 %v178, %v177
    %v192 = vpack.c.b16 %v180, %v179
    %v193 = vpack.c.b16 %v182, %v181
    %v194 = vpack.c.b16 %v184, %v183
    %v195 = vpack.c.b16 %v186, %v185
    %v196 = vpack.c.b16 %v188, %v187
    %205 = vmatprep.subr.bf16.mxu0 0
    %206 = vmatpush1.bf16.msra.mxu0 %v189
    %207 = vmatprep.subr.bf16.mxu0 0
    %208 = vmatpush1.bf16.msra.mxu0 %v190
    %209 = vmatprep.subr.bf16.mxu0 0
    %210 = vmatpush1.bf16.msra.mxu0 %v191
    %211 = vmatprep.subr.bf16.mxu0 0
    %212 = vmatpush1.bf16.msra.mxu0 %v192
    %213 = vmatprep.subr.bf16.mxu0 0
    %214 = vmatpush1.bf16.msra.mxu0 %v193
    %215 = vmatprep.subr.bf16.mxu0 0
    %216 = vmatpush1.bf16.msra.mxu0 %v194
    %217 = vmatprep.subr.bf16.mxu0 0
    %218 = vmatpush1.bf16.msra.mxu0 %v195
    %219 = vmatprep.subr.bf16.mxu0 0
    %220 = vmatpush1.bf16.msra.mxu0 %v196
    %221 = vmatprep.subr.bf16.mxu0 0
    %222 = vmatpush1.bf16.msra.mxu0 0
    %223 = vmatprep.subr.bf16.mxu0 0
    %224 = vmatpush1.bf16.msra.mxu0 0
    %225 = vmatprep.subr.bf16.mxu0 0
    %226 = vmatpush1.bf16.msra.mxu0 0
    %227 = vmatprep.subr.bf16.mxu0 0
    %228 = vmatpush1.bf16.msra.mxu0 0
    %229 = vmatprep.subr.bf16.mxu0 0
    %230 = vmatpush1.bf16.msra.mxu0 0
    %231 = vmatprep.subr.bf16.mxu0 0
    %232 = vmatpush1.bf16.msra.mxu0 0
    %233 = vmatprep.subr.bf16.mxu0 0
    %234 = vmatpush1.bf16.msra.mxu0 0
    %235 = vmatprep.subr.bf16.mxu0 0
    %236 = vmatpush1.bf16.msra.mxu0 0
    %237 = vmatprep.mubr.bf16.mxu0 0
    %238 = vmatmul.mubr.bf16.gmra.mrb[0].mxu0 %v155
    %v239 = vpop.f32.mrb[0].mxu0
    %v240 = vadd.f32 %v149, %v239
    %v241 = vpop.f32.mrb[0].mxu0
    %v242 = vpop.f32.mrb[0].mxu0
    %v243 = vadd.f32 %v149, %v242
    %v244 = vpop.f32.mrb[0].mxu0
    %245 = vdwg.mxu0
    %v246 = vmax.f32 %v240, 0.0
    %v247 = vmax.f32 %v243, 0.0
    %v248 = vpack.c.bf16 %v247, %v246
    %v249 = vld [vmem:[#allocation7] sm:$0xf]
    %v250 = vld [vmem:[#allocation7 + $0x4] sm:$0xf]
    %v251 = vld [vmem:[#allocation7 + $0x8] sm:$0xf]
    %v252 = vld [vmem:[#allocation7 + $0xc] sm:$0xf]
    %v253 = vld [vmem:[#allocation7 + $0x10] sm:$0xf]
    %v254 = vld [vmem:[#allocation7 + $0x14] sm:$0xf]
    %v255 = vld [vmem:[#allocation7 + $0x18] sm:$0xf]
    %v256 = vld [vmem:[#allocation7 + $0x1c] sm:$0xf]
    %v257 = vld [vmem:[#allocation7 + $0x20] sm:$0xf]
    %v258 = vld [vmem:[#allocation7 + $0x24] sm:$0xf]
    %v259 = vld [vmem:[#allocation7 + $0x28] sm:$0xf]
    %v260 = vld [vmem:[#allocation7 + $0x2c] sm:$0xf]
    %v261 = vld [vmem:[#allocation7 + $0x30] sm:$0xf]
    %v262 = vld [vmem:[#allocation7 + $0x34] sm:$0xf]
    %v263 = vld [vmem:[#allocation7 + $0x38] sm:$0xf]
    %v264 = vld [vmem:[#allocation7 + $0x3c] sm:$0xf]
    %v265 = vld [vmem:[%s4] sm:$0x1]
    %v267 = vlaneseq
    %v268 = vshrl.u32 %v267, 7
    %v269 = vsub.s32 0, %v268
    %v270 = vrot.slane %v265, %v269
    %v288 = vunpack.c.l.b16 %v249
    %v289 = vunpack.c.l.b16 %v250
    %v290 = vunpack.c.l.b16 %v251
    %v291 = vunpack.c.l.b16 %v252
    %v292 = vunpack.c.l.b16 %v253
    %v293 = vunpack.c.l.b16 %v254
    %v294 = vunpack.c.l.b16 %v255
    %v295 = vunpack.c.l.b16 %v256
    %v296 = vunpack.c.l.b16 %v257
    %v297 = vunpack.c.l.b16 %v258
    %v298 = vunpack.c.l.b16 %v259
    %v299 = vunpack.c.l.b16 %v260
    %v300 = vunpack.c.l.b16 %v261
    %v301 = vunpack.c.l.b16 %v262
    %v302 = vunpack.c.l.b16 %v263
    %v303 = vunpack.c.l.b16 %v264
    %v304 = vpack.c.b16 %v289, %v288
    %v305 = vpack.c.b16 %v291, %v290
    %v306 = vpack.c.b16 %v293, %v292
    %v307 = vpack.c.b16 %v295, %v294
    %v308 = vpack.c.b16 %v297, %v296
    %v309 = vpack.c.b16 %v299, %v298
    %v310 = vpack.c.b16 %v301, %v300
    %v311 = vpack.c.b16 %v303, %v302
    %320 = vmatprep.subr.bf16.mxu0 0
    %321 = vmatpush1.bf16.msra.mxu0 %v304
    %322 = vmatprep.subr.bf16.mxu0 0
    %323 = vmatpush1.bf16.msra.mxu0 %v305
    %324 = vmatprep.subr.bf16.mxu0 0
    %325 = vmatpush1.bf16.msra.mxu0 %v306
    %326 = vmatprep.subr.bf16.mxu0 0
    %327 = vmatpush1.bf16.msra.mxu0 %v307
    %328 = vmatprep.subr.bf16.mxu0 0
    %329 = vmatpush1.bf16.msra.mxu0 %v308
    %330 = vmatprep.subr.bf16.mxu0 0
    %331 = vmatpush1.bf16.msra.mxu0 %v309
    %332 = vmatprep.subr.bf16.mxu0 0
    %333 = vmatpush1.bf16.msra.mxu0 %v310
    %334 = vmatprep.subr.bf16.mxu0 0
    %335 = vmatpush1.bf16.msra.mxu0 %v311
    %336 = vmatprep.subr.bf16.mxu0 0
    %337 = vmatpush1.bf16.msra.mxu0 0
    %338 = vmatprep.subr.bf16.mxu0 0
    %339 = vmatpush1.bf16.msra.mxu0 0
    %340 = vmatprep.subr.bf16.mxu0 0
    %341 = vmatpush1.bf16.msra.mxu0 0
    %342 = vmatprep.subr.bf16.mxu0 0
    %343 = vmatpush1.bf16.msra.mxu0 0
    %344 = vmatprep.subr.bf16.mxu0 0
    %345 = vmatpush1.bf16.msra.mxu0 0
    %346 = vmatprep.subr.bf16.mxu0 0
    %347 = vmatpush1.bf16.msra.mxu0 0
    %348 = vmatprep.subr.bf16.mxu0 0
    %349 = vmatpush1.bf16.msra.mxu0 0
    %350 = vmatprep.subr.bf16.mxu0 0
    %351 = vmatpush1.bf16.msra.mxu0 0
    %352 = vmatprep.mubr.bf16.mxu0 0
    %353 = vmatmul.mubr.bf16.gmra.mrb[0].mxu0 %v248
    %v354 = vpop.f32.mrb[0].mxu0
    %v355 = vadd.f32 %v270, %v354
    %v356 = vpop.f32.mrb[0].mxu0
    %v357 = vpop.f32.mrb[0].mxu0
    %v358 = vadd.f32 %v270, %v357
    %v359 = vpop.f32.mrb[0].mxu0
    %360 = vdwg.mxu0
    %v361 = vpack.c.bf16 %v358, %v355
    %v363 = vunpack.c.l.b16 %v361
    %v364 = vunpack.c.h.b16 %v361
    %v365 = vpack.c.b16 %v363, %v363
    %v366 = vpack.c.b16 %v364, %v364
    %369 = vst [vmem:[#allocation13] sm:$0xf] %v365
    %370 = vst [vmem:[#allocation13 + $0x4] sm:$0xf] %v366
    %v371 = vmax.f32 %v355, 0.0
    %v372 = vmax.f32 %v358, 0.0
    %v373 = vpack.c.bf16 %v372, %v371
    %v374 = vld [vmem:[#allocation8] sm:$0xf]
    %v375 = vld [vmem:[#allocation8 + $0x4] sm:$0xf]
    %v376 = vld [vmem:[#allocation8 + $0x8] sm:$0xf]
    %v377 = vld [vmem:[#allocation8 + $0xc] sm:$0xf]
    %v378 = vld [vmem:[#allocation8 + $0x10] sm:$0xf]
    %v379 = vld [vmem:[#allocation8 + $0x14] sm:$0xf]
    %v380 = vld [vmem:[#allocation8 + $0x18] sm:$0xf]
    %v381 = vld [vmem:[#allocation8 + $0x1c] sm:$0xf]
    %v382 = vld [vmem:[#allocation8 + $0x20] sm:$0xf]
    %v383 = vld [vmem:[#allocation8 + $0x24] sm:$0xf]
    %v384 = vld [vmem:[#allocation8 + $0x28] sm:$0xf]
    %v385 = vld [vmem:[#allocation8 + $0x2c] sm:$0xf]
    %v386 = vld [vmem:[#allocation8 + $0x30] sm:$0xf]
    %v387 = vld [vmem:[#allocation8 + $0x34] sm:$0xf]
    %v388 = vld [vmem:[#allocation8 + $0x38] sm:$0xf]
    %v389 = vld [vmem:[#allocation8 + $0x3c] sm:$0xf]
    %v390 = vld [vmem:[%s6] sm:$0x1]
    %v392 = vlaneseq
    %v393 = vshrl.u32 %v392, 7
    %v394 = vsub.s32 0, %v393
    %v395 = vrot.slane %v390, %v394
    %v413 = vunpack.c.l.b16 %v374
    %v414 = vunpack.c.l.b16 %v375
    %v415 = vunpack.c.l.b16 %v376
    %v416 = vunpack.c.l.b16 %v377
    %v417 = vunpack.c.l.b16 %v378
    %v418 = vunpack.c.l.b16 %v379
    %v419 = vunpack.c.l.b16 %v380
    %v420 = vunpack.c.l.b16 %v381
    %v421 = vunpack.c.l.b16 %v382
    %v422 = vunpack.c.l.b16 %v383
    %v423 = vunpack.c.l.b16 %v384
    %v424 = vunpack.c.l.b16 %v385
    %v425 = vunpack.c.l.b16 %v386
    %v426 = vunpack.c.l.b16 %v387
    %v427 = vunpack.c.l.b16 %v388
    %v428 = vunpack.c.l.b16 %v389
    %v429 = vpack.c.b16 %v414, %v413
    %v430 = vpack.c.b16 %v416, %v415
    %v431 = vpack.c.b16 %v418, %v417
    %v432 = vpack.c.b16 %v420, %v419
    %v433 = vpack.c.b16 %v422, %v421
    %v434 = vpack.c.b16 %v424, %v423
    %v435 = vpack.c.b16 %v426, %v425
    %v436 = vpack.c.b16 %v428, %v427
    %445 = vmatprep.subr.bf16.mxu0 0
    %446 = vmatpush1.bf16.msra.mxu0 %v429
    %447 = vmatprep.subr.bf16.mxu0 0
    %448 = vmatpush1.bf16.msra.mxu0 %v430
    %449 = vmatprep.subr.bf16.mxu0 0
    %450 = vmatpush1.bf16.msra.mxu0 %v431
    %451 = vmatprep.subr.bf16.mxu0 0
    %452 = vmatpush1.bf16.msra.mxu0 %v432
    %453 = vmatprep.subr.bf16.mxu0 0
    %454 = vmatpush1.bf16.msra.mxu0 %v433
    %455 = vmatprep.subr.bf16.mxu0 0
    %456 = vmatpush1.bf16.msra.mxu0 %v434
    %457 = vmatprep.subr.bf16.mxu0 0
    %458 = vmatpush1.bf16.msra.mxu0 %v435
    %459 = vmatprep.subr.bf16.mxu0 0
    %460 = vmatpush1.bf16.msra.mxu0 %v436
    %461 = vmatprep.subr.bf16.mxu0 0
    %462 = vmatpush1.bf16.msra.mxu0 0
    %463 = vmatprep.subr.bf16.mxu0 0
    %464 = vmatpush1.bf16.msra.mxu0 0
    %465 = vmatprep.subr.bf16.mxu0 0
    %466 = vmatpush1.bf16.msra.mxu0 0
    %467 = vmatprep.subr.bf16.mxu0 0
    %468 = vmatpush1.bf16.msra.mxu0 0
    %469 = vmatprep.subr.bf16.mxu0 0
    %470 = vmatpush1.bf16.msra.mxu0 0
    %471 = vmatprep.subr.bf16.mxu0 0
    %472 = vmatpush1.bf16.msra.mxu0 0
    %473 = vmatprep.subr.bf16.mxu0 0
    %474 = vmatpush1.bf16.msra.mxu0 0
    %475 = vmatprep.subr.bf16.mxu0 0
    %476 = vmatpush1.bf16.msra.mxu0 0
    %477 = vmatprep.mubr.bf16.mxu0 0
    %478 = vmatmul.mubr.bf16.gmra.mrb[0].mxu0 %v373
    %v479 = vpop.f32.mrb[0].mxu0
    %v480 = vadd.f32 %v395, %v479
    %v481 = vpop.f32.mrb[0].mxu0
    %v482 = vpop.f32.mrb[0].mxu0
    %v483 = vadd.f32 %v395, %v482
    %v484 = vpop.f32.mrb[0].mxu0
    %485 = vdwg.mxu0
    %v486 = vmax.f32 %v480, 0.0
    %v487 = vmax.f32 %v483, 0.0
    %v488 = vpack.c.bf16 %v487, %v486
    %v489 = vld [vmem:[#allocation10] sm:$0xf]
    %v490 = vld [vmem:[#allocation10 + $0x4] sm:$0xf]
    %v491 = vld [vmem:[#allocation10 + $0x8] sm:$0xf]
    %v492 = vld [vmem:[#allocation10 + $0xc] sm:$0xf]
    %v493 = vld [vmem:[#allocation10 + $0x10] sm:$0xf]
    %v494 = vld [vmem:[#allocation10 + $0x14] sm:$0xf]
    %v495 = vld [vmem:[#allocation10 + $0x18] sm:$0xf]
    %v496 = vld [vmem:[#allocation10 + $0x1c] sm:$0xf]
    %v497 = vld [vmem:[#allocation10 + $0x20] sm:$0xf]
    %v498 = vld [vmem:[#allocation10 + $0x24] sm:$0xf]
    %v499 = vld [vmem:[#allocation10 + $0x28] sm:$0xf]
    %v500 = vld [vmem:[#allocation10 + $0x2c] sm:$0xf]
    %v501 = vld [vmem:[#allocation10 + $0x30] sm:$0xf]
    %v502 = vld [vmem:[#allocation10 + $0x34] sm:$0xf]
    %v503 = vld [vmem:[#allocation10 + $0x38] sm:$0xf]
    %v504 = vld [vmem:[#allocation10 + $0x3c] sm:$0xf]
    %v505 = vld [vmem:[%s8] sm:$0x1]
    %v507 = vlaneseq
    %v508 = vshrl.u32 %v507, 7
    %v509 = vsub.s32 0, %v508
    %v510 = vrot.slane %v505, %v509
    %v528 = vunpack.c.l.b16 %v489
    %v529 = vunpack.c.l.b16 %v490
    %v530 = vunpack.c.l.b16 %v491
    %v531 = vunpack.c.l.b16 %v492
    %v532 = vunpack.c.l.b16 %v493
    %v533 = vunpack.c.l.b16 %v494
    %v534 = vunpack.c.l.b16 %v495
    %v535 = vunpack.c.l.b16 %v496
    %v536 = vunpack.c.l.b16 %v497
    %v537 = vunpack.c.l.b16 %v498
    %v538 = vunpack.c.l.b16 %v499
    %v539 = vunpack.c.l.b16 %v500
    %v540 = vunpack.c.l.b16 %v501
    %v541 = vunpack.c.l.b16 %v502
    %v542 = vunpack.c.l.b16 %v503
    %v543 = vunpack.c.l.b16 %v504
    %v544 = vpack.c.b16 %v529, %v528
    %v545 = vpack.c.b16 %v531, %v530
    %v546 = vpack.c.b16 %v533, %v532
    %v547 = vpack.c.b16 %v535, %v534
    %v548 = vpack.c.b16 %v537, %v536
    %v549 = vpack.c.b16 %v539, %v538
    %v550 = vpack.c.b16 %v541, %v540
    %v551 = vpack.c.b16 %v543, %v542
    %560 = vmatprep.subr.bf16.mxu0 0
    %561 = vmatpush1.bf16.msra.mxu0 %v544
    %562 = vmatprep.subr.bf16.mxu0 0
    %563 = vmatpush1.bf16.msra.mxu0 %v545
    %564 = vmatprep.subr.bf16.mxu0 0
    %565 = vmatpush1.bf16.msra.mxu0 %v546
    %566 = vmatprep.subr.bf16.mxu0 0
    %567 = vmatpush1.bf16.msra.mxu0 %v547
    %568 = vmatprep.subr.bf16.mxu0 0
    %569 = vmatpush1.bf16.msra.mxu0 %v548
    %570 = vmatprep.subr.bf16.mxu0 0
    %571 = vmatpush1.bf16.msra.mxu0 %v549
    %572 = vmatprep.subr.bf16.mxu0 0
    %573 = vmatpush1.bf16.msra.mxu0 %v550
    %574 = vmatprep.subr.bf16.mxu0 0
    %575 = vmatpush1.bf16.msra.mxu0 %v551
    %576 = vmatprep.subr.bf16.mxu0 0
    %577 = vmatpush1.bf16.msra.mxu0 0
    %578 = vmatprep.subr.bf16.mxu0 0
    %579 = vmatpush1.bf16.msra.mxu0 0
    %580 = vmatprep.subr.bf16.mxu0 0
    %581 = vmatpush1.bf16.msra.mxu0 0
    %582 = vmatprep.subr.bf16.mxu0 0
    %583 = vmatpush1.bf16.msra.mxu0 0
    %584 = vmatprep.subr.bf16.mxu0 0
    %585 = vmatpush1.bf16.msra.mxu0 0
    %586 = vmatprep.subr.bf16.mxu0 0
    %587 = vmatpush1.bf16.msra.mxu0 0
    %588 = vmatprep.subr.bf16.mxu0 0
    %589 = vmatpush1.bf16.msra.mxu0 0
    %590 = vmatprep.subr.bf16.mxu0 0
    %591 = vmatpush1.bf16.msra.mxu0 0
    %592 = vmatprep.mubr.bf16.mxu0 0
    %593 = vmatmul.mubr.bf16.gmra.mrb[0].mxu0 %v488
    %v594 = vpop.f32.mrb[0].mxu0
    %v595 = vadd.f32 %v510, %v594
    %v596 = vpop.f32.mrb[0].mxu0
    %v597 = vpop.f32.mrb[0].mxu0
    %v598 = vadd.f32 %v510, %v597
    %v599 = vpop.f32.mrb[0].mxu0
    %600 = vdwg.mxu0
    %v601 = vpack.c.bf16 %v598, %v595
    %v603 = vunpack.c.l.b16 %v601
    %v604 = vunpack.c.h.b16 %v601
    %v605 = vpack.c.b16 %v603, %v603
    %v606 = vpack.c.b16 %v604, %v604
    %609 = vst [vmem:[#allocation14] sm:$0xf] %v605
    %610 = vst [vmem:[#allocation14 + $0x4] sm:$0xf] %v606
    %v611 = vmax.f32 %v595, 0.0
    %v612 = vmax.f32 %v598, 0.0
    %v613 = vpack.c.bf16 %v612, %v611
    %v614 = vld [vmem:[#allocation11] sm:$0xf]
    %v615 = vld [vmem:[#allocation11 + $0x4] sm:$0xf]
    %v616 = vld [vmem:[#allocation11 + $0x8] sm:$0xf]
    %v617 = vld [vmem:[#allocation11 + $0xc] sm:$0xf]
    %v618 = vld [vmem:[#allocation11 + $0x10] sm:$0xf]
    %v619 = vld [vmem:[#allocation11 + $0x14] sm:$0xf]
    %v620 = vld [vmem:[#allocation11 + $0x18] sm:$0xf]
    %v621 = vld [vmem:[#allocation11 + $0x1c] sm:$0xf]
    %v622 = vld [vmem:[#allocation11 + $0x20] sm:$0xf]
    %v623 = vld [vmem:[#allocation11 + $0x24] sm:$0xf]
    %v624 = vld [vmem:[#allocation11 + $0x28] sm:$0xf]
    %v625 = vld [vmem:[#allocation11 + $0x2c] sm:$0xf]
    %v626 = vld [vmem:[#allocation11 + $0x30] sm:$0xf]
    %v627 = vld [vmem:[#allocation11 + $0x34] sm:$0xf]
    %v628 = vld [vmem:[#allocation11 + $0x38] sm:$0xf]
    %v629 = vld [vmem:[#allocation11 + $0x3c] sm:$0xf]
    %v630 = vld [vmem:[%s10] sm:$0x1]
    %v632 = vlaneseq
    %v633 = vshrl.u32 %v632, 7
    %v634 = vsub.s32 0, %v633
    %v635 = vrot.slane %v630, %v634
    %v653 = vunpack.c.l.b16 %v614
    %v654 = vunpack.c.l.b16 %v615
    %v655 = vunpack.c.l.b16 %v616
    %v656 = vunpack.c.l.b16 %v617
    %v657 = vunpack.c.l.b16 %v618
    %v658 = vunpack.c.l.b16 %v619
    %v659 = vunpack.c.l.b16 %v620
    %v660 = vunpack.c.l.b16 %v621
    %v661 = vunpack.c.l.b16 %v622
    %v662 = vunpack.c.l.b16 %v623
    %v663 = vunpack.c.l.b16 %v624
    %v664 = vunpack.c.l.b16 %v625
    %v665 = vunpack.c.l.b16 %v626
    %v666 = vunpack.c.l.b16 %v627
    %v667 = vunpack.c.l.b16 %v628
    %v668 = vunpack.c.l.b16 %v629
    %v669 = vpack.c.b16 %v654, %v653
    %v670 = vpack.c.b16 %v656, %v655
    %v671 = vpack.c.b16 %v658, %v657
    %v672 = vpack.c.b16 %v660, %v659
    %v673 = vpack.c.b16 %v662, %v661
    %v674 = vpack.c.b16 %v664, %v663
    %v675 = vpack.c.b16 %v666, %v665
    %v676 = vpack.c.b16 %v668, %v667
    %685 = vmatprep.subr.bf16.mxu0 0
    %686 = vmatpush1.bf16.msra.mxu0 %v669
    %687 = vmatprep.subr.bf16.mxu0 0
    %688 = vmatpush1.bf16.msra.mxu0 %v670
    %689 = vmatprep.subr.bf16.mxu0 0
    %690 = vmatpush1.bf16.msra.mxu0 %v671
    %691 = vmatprep.subr.bf16.mxu0 0
    %692 = vmatpush1.bf16.msra.mxu0 %v672
    %693 = vmatprep.subr.bf16.mxu0 0
    %694 = vmatpush1.bf16.msra.mxu0 %v673
    %695 = vmatprep.subr.bf16.mxu0 0
    %696 = vmatpush1.bf16.msra.mxu0 %v674
    %697 = vmatprep.subr.bf16.mxu0 0
    %698 = vmatpush1.bf16.msra.mxu0 %v675
    %699 = vmatprep.subr.bf16.mxu0 0
    %700 = vmatpush1.bf16.msra.mxu0 %v676
    %701 = vmatprep.subr.bf16.mxu0 0
    %702 = vmatpush1.bf16.msra.mxu0 0
    %703 = vmatprep.subr.bf16.mxu0 0
    %704 = vmatpush1.bf16.msra.mxu0 0
    %705 = vmatprep.subr.bf16.mxu0 0
    %706 = vmatpush1.bf16.msra.mxu0 0
    %707 = vmatprep.subr.bf16.mxu0 0
    %708 = vmatpush1.bf16.msra.mxu0 0
    %709 = vmatprep.subr.bf16.mxu0 0
    %710 = vmatpush1.bf16.msra.mxu0 0
    %711 = vmatprep.subr.bf16.mxu0 0
    %712 = vmatpush1.bf16.msra.mxu0 0
    %713 = vmatprep.subr.bf16.mxu0 0
    %714 = vmatpush1.bf16.msra.mxu0 0
    %715 = vmatprep.subr.bf16.mxu0 0
    %716 = vmatpush1.bf16.msra.mxu0 0
    %717 = vmatprep.mubr.bf16.mxu0 0
    %718 = vmatmul.mubr.bf16.gmra.mrb[0].mxu0 %v613
    %v719 = vpop.f32.mrb[0].mxu0
    %v720 = vadd.f32 %v635, %v719
    %v721 = vpop.f32.mrb[0].mxu0
    %v722 = vpop.f32.mrb[0].mxu0
    %v723 = vadd.f32 %v635, %v722
    %v724 = vpop.f32.mrb[0].mxu0
    %725 = vdwg.mxu0
    %v726 = vxor.u32 %v720, 2147483648
    %v727 = vxor.u32 %v723, 2147483648
    %v728 = vmul.f32 %v726, 1.442695
    %v729 = vpow.pop %v728
    %v730 = vmul.f32 %v727, 1.442695
    %v731 = vpow.pop %v730
    %v732 = vadd.f32 %v729, 1.0
    %v733 = vadd.f32 %v731, 1.0
    %v734 = vrcp.pop %v732
    %v735 = vmul.f32 1.0, %v734
    %v736 = vrcp.pop %v733
    %v737 = vmul.f32 1.0, %v736
    %738 = vst [vmem:[#allocation16] sm:$0xff] %v735
    %739 = vst [vmem:[#allocation16 + $0x8] sm:$0xff] %v737
    // Predicated region
    $region70: #{tpu_custom_call.1} parent=1 // pred_check
      _
    $region71: #{tpu_custom_call.1} parent=1 // pred_check_branch
      %741 = sbr.rel (0) target = $region73
    $region72: #{tpu_custom_call.1} parent=1 // pred_region
      %s743 = ssub.s32 128, 128
      %744 = vsyncadd [#allocation4], %s743
      %s745 = sshll.u32 [#allocation13], 4
      %s746 = int_to_ptr.vmem [resolvable:$true] %s745
      %751 = dma.vmem_to_hbm [thread:$0]  %s746, 128, %s11, [#allocation4], 64, 64, 4
    $region73: #{tpu_custom_call.1} parent=1 // pred_fallthru
      _
    // Predicated region
    $region74: #{tpu_custom_call.1} parent=1 // pred_check
      _
    $region75: #{tpu_custom_call.1} parent=1 // pred_check_branch
      %753 = sbr.rel (0) target = $region77
    $region76: #{tpu_custom_call.1} parent=1 // pred_region
      %s755 = ssub.s32 128, 128
      %756 = vsyncadd [#allocation15], %s755
      %s757 = sshll.u32 [#allocation14], 4
      %s758 = int_to_ptr.vmem [resolvable:$true] %s757
      %763 = dma.vmem_to_hbm [thread:$0]  %s758, 128, %s12, [#allocation15], 64, 64, 4
    $region77: #{tpu_custom_call.1} parent=1 // pred_fallthru
      _
    // Predicated region
    $region78: #{tpu_custom_call.1} parent=1 // pred_check
      _
    $region79: #{tpu_custom_call.1} parent=1 // pred_check_branch
      %765 = sbr.rel (0) target = $region81
    $region80: #{tpu_custom_call.1} parent=1 // pred_region
      %s767 = ssub.s32 256, 256
      %768 = vsyncadd [#allocation15], %s767
      %s769 = sshll.u32 [#allocation16], 4
      %s770 = int_to_ptr.vmem [resolvable:$true] %s769
      %775 = dma.vmem_to_hbm [thread:$0]  %s770, 256, %s13, [#allocation15], 128, 128, 8
    $region81: #{tpu_custom_call.1} parent=1 // pred_fallthru
      _
    // Predicated region
    $region82: #{tpu_custom_call.1} parent=1 // pred_check
      _
    $region83: #{tpu_custom_call.1} parent=1 // pred_check_branch
      %777 = sbr.rel (0) target = $region85
    $region84: #{tpu_custom_call.1} parent=1 // pred_region
      %778 = dma.done [#allocation4], 128
    $region85: #{tpu_custom_call.1} parent=1 // pred_fallthru
      _
    // Predicated region
    $region86: #{tpu_custom_call.1} parent=1 // pred_check
      _
    $region87: #{tpu_custom_call.1} parent=1 // pred_check_branch
      %780 = sbr.rel (0) target = $region89
    $region88: #{tpu_custom_call.1} parent=1 // pred_region
      %781 = dma.done [#allocation15], 128
    $region89: #{tpu_custom_call.1} parent=1 // pred_fallthru
      _
    // Predicated region
    $region90: #{tpu_custom_call.1} parent=1 // pred_check
      _
    $region91: #{tpu_custom_call.1} parent=1 // pred_check_branch
      %783 = sbr.rel (0) target = $region93
    $region92: #{tpu_custom_call.1} parent=1 // pred_region
      %784 = dma.done [#allocation15], 256
    $region93: #{tpu_custom_call.1} parent=1 // pred_fallthru
      _
    %785 = vsyncpa [#allocation3], 1
    %786 = vsyncpa [#allocation6], 1
    %787 = vsyncpa [#allocation9], 1
    %788 = vsyncpa [#allocation12], 1
    %789 = vsyncpa [#allocation4], 1
    %790 = vsyncpa [#allocation15], 1

</llo_original>
